<compile_context>
chip_gen: v7x
topology: tpu7x:2x2x1
jax: 0.10.0
libtpu: 0.0.40
codegen_flags: <defaults>
</compile_context>

<pallas_src>
import jax
import jax.numpy as jnp
from jax import lax
from jax.experimental import pallas as pl
from jax.experimental.pallas import tpu as pltpu

_MIB = 1024 * 1024


def _pad_value(dtype):
    """Dtype-aware 'minus infinity' used for max-pool padding."""
    dtype = jnp.dtype(dtype)
    if jnp.issubdtype(dtype, jnp.floating):
        return float("-inf")
    return int(jnp.iinfo(dtype).min)


def _make_spp_kernel(H, W, G, L, dtype):
    neg = _pad_value(dtype)

    def kernel(x_ref, o_ref, src_ref, mid_ref):
        # x_ref:   (1, H, W, G, L)      input tile, channels on lanes
        # o_ref:   (1, H, W, 4, G, L)   per-pixel [max5, max9, max13, identity]
        # src_ref: (H, W + 4, G, L)     stage input with -inf W-border columns
        # mid_ref: (H + 4, W, G, L)     W-maxed intermediate with -inf H-border rows
        #
        # vreg dims are (G, L); H, W and the stage axis are leading dims, so all
        # shifted reads below are leading-axis offset loads (no XLU, no copies).

        # One-time -inf border init: the scratch persists across grid steps and
        # the interior writes below never touch the borders.  Gated on the
        # "arbitrary" channel-tile axis so it runs on every TensorCore.
        @pl.when(pl.program_id(1) == 0)
        def _():
            src_ref[:, pl.ds(0, 2)] = jnp.full((H, 2, G, L), neg, dtype)
            src_ref[:, pl.ds(W + 2, 2)] = jnp.full((H, 2, G, L), neg, dtype)
            mid_ref[pl.ds(0, 2)] = jnp.full((2, W, G, L), neg, dtype)
            mid_ref[pl.ds(H + 2, 2)] = jnp.full((2, W, G, L), neg, dtype)

        # Seed the cascade and emit the identity block: one load, two stores/row.
        def seed_row(h, carry):
            row = x_ref[0, h]                       # (W, G, L)
            src_ref[h, pl.ds(2, W)] = row
            o_ref[0, h, :, 3] = row
            return carry

        lax.fori_loop(0, H, seed_row, 0)

        # 5x5 'same' max-pool cascade: stage s output == max{5,9,13}(x).
        for stage in range(3):

            def w_row(h, carry):
                # 5-tap max along W from the W-padded stage input.
                r = src_ref[h, pl.ds(0, W)]
                for d in range(1, 5):
                    r = jnp.maximum(r, src_ref[h, pl.ds(d, W)])
                mid_ref[h + 2] = r
                return carry

            lax.fori_loop(0, H, w_row, 0)

            def h_row(h, carry):
                # 5-tap max along H from the H-padded intermediate.
                r = mid_ref[h]
                for d in range(1, 5):
                    r = jnp.maximum(r, mid_ref[h + d])
                o_ref[0, h, :, stage] = r
                if stage < 2:
                    # Re-seed the stage input for the next cascade step
                    # (replaces a separate copy-in pass; W-borders stay -inf).
                    src_ref[h, pl.ds(2, W)] = r
                return carry

            lax.fori_loop(0, H, h_row, 0)

    return kernel


def _vmem_capacity_bytes():
    try:
        return int(pltpu.get_tpu_info().vmem_capacity_bytes)
    except Exception:  # non-TPU backend / older runtime: assume v5e/v6e-class
        return 128 * _MIB


def _padded_tile_elems(G, L):
    """Elements per (h, w) position after (8, 128) sublane/lane tile padding."""
    return ((G + 7) // 8) * 8 * ((L + 127) // 128) * 128


def _footprint_bytes(H, W, G, L, itemsize):
    """Approximate per-step VMEM footprint: double-buffered blocks + scratch."""
    per_pos = _padded_tile_elems(G, L) * itemsize
    blocks = 2 * (1 + 4) * H * W * per_pos            # in + out, double-buffered
    scratch = (H * (W + 4) + (H + 4) * W) * per_pos   # src + mid pads (single)
    return blocks + scratch


def _pick_group_tile(N, G_total, H, W, L, itemsize, budget):
    """Channel-group tile: multiple of 8 sublanes (or whole dim) under the budget."""
    cands = [G_total] + [g for g in range(8, G_total, 8) if G_total % g == 0]
    fitting = [g for g in cands if _footprint_bytes(H, W, g, L, itemsize) <= budget]
    if not fitting:
        # TODO(synk): add an H-tile grid axis with a 6-row halo (2 rows per
        # cascade stage) for very large H*W where even the smallest legal
        # channel tile exceeds the VMEM budget.
        return min(cands)
    # Prefer >= 8 grid steps so the pipeline hides the 4x-sized output
    # writeback, then the largest tile (per-step overhead is only ~0.35 us).
    deep = [g for g in fitting if N * (G_total // g) >= 8]
    return max(deep) if deep else max(fitting)


def spp_nhwc(x_nhwc):
    """SPP on channels-last input: (N, H, W, C) -> (N, H, W, 4*C).

    Output channel blocks are [max5 | max9 | max13 | identity], i.e. exactly
    torch.cat((maxpool5(x), maxpool9(x), maxpool13(x), x), dim=channel).
    This is the performance path: no layout transposes anywhere.
    """
    N, H, W, C = x_nhwc.shape
    dtype = x_nhwc.dtype
    itemsize = jnp.dtype(dtype).itemsize

    # Channels -> (groups, lanes): 128 lanes whenever possible so the group dim
    # rides the sublanes and every load/store is lane-dense.
    if C % 128 == 0:
        L, G_total = 128, C // 128
    else:
        L, G_total = C, 1   # small / odd C: correct but lane-sparse

    # Generation-aware VMEM budget (v7x: 64 MiB physical; v5e/v6e: 128 MiB).
    cap = _vmem_capacity_bytes()
    if cap >= 100 * _MIB:
        vmem_limit, budget = 48 * _MIB, 20 * _MIB
    else:
        vmem_limit, budget = 32 * _MIB, 14 * _MIB

    G = _pick_group_tile(N, G_total, H, W, L, itemsize, budget)
    num_ct = G_total // G

    x5 = x_nhwc.reshape(N, H, W, G_total, L)   # free (contiguous split of C)
    kernel = _make_spp_kernel(H, W, G, L, dtype)

    out = pl.pallas_call(
        kernel,
        out_shape=jax.ShapeDtypeStruct((N, H, W, 4, G_total, L), dtype),
        grid_spec=pltpu.PrefetchScalarGridSpec(
            num_scalar_prefetch=0,
            grid=(N, num_ct),
            in_specs=[pl.BlockSpec((1, H, W, G, L),
                                   lambda n, c: (n, 0, 0, c, 0))],
            out_specs=pl.BlockSpec((1, H, W, 4, G, L),
                                   lambda n, c: (n, 0, 0, 0, c, 0)),
            scratch_shapes=[
                pltpu.VMEM((H, W + 4, G, L), dtype),
                pltpu.VMEM((H + 4, W, G, L), dtype),
            ],
        ),
        compiler_params=pltpu.CompilerParams(
            # Batch axis feeds v7x's two TensorCores; the channel-tile axis is
            # "arbitrary" so the once-only border init runs on every core.
            dimension_semantics=("parallel", "arbitrary"),
            vmem_limit_bytes=vmem_limit,
        ),
    )(x5)

    # Free contiguous reshape: (N, H, W, 4, G_total, L) -> (N, H, W, 4*C).
    return out.reshape(N, H, W, 4 * C)


def spp(x_nchw):
    """Drop-in NCHW equivalent of the torch SPP module: (N,C,H,W) -> (N,4C,H,W).

    The two transposes below are torch-layout compatibility plumbing only;
    callers that can stay channels-last should use spp_nhwc directly.
    """
    y = spp_nhwc(jnp.transpose(x_nchw, (0, 2, 3, 1)))   # (N, H, W, 4C)
    return jnp.transpose(y, (0, 3, 1, 2))                # (N, 4C, H, W)


def _spp_reference_nchw(x):
    """Pure-JAX reference matching torch.nn.MaxPool2d(k, stride=1, padding=k//2)."""
    def pool(k):
        p = k // 2
        return lax.reduce_window(
            x, -jnp.inf, lax.max,
            window_dimensions=(1, 1, k, k),
            window_strides=(1, 1, 1, 1),
            padding=((0, 0), (0, 0), (p, p), (p, p)),
        )
    return jnp.concatenate([pool(5), pool(9), pool(13), x], axis=1)


if __name__ == "__main__":
    key = jax.random.PRNGKey(0)
    # Small NCHW shape consistent with the module (original input: 8, 32, 16, 16).
    x = jax.random.normal(key, (2, 4, 16, 16), dtype=jnp.float32)

    out = jax.block_until_ready(spp(x))

    ref = _spp_reference_nchw(x)
    assert out.shape == (2, 16, 16, 16), out.shape
    assert jnp.allclose(out, ref, atol=1e-6, rtol=1e-6), "mismatch vs reference"

    print("KERNEL_OK")
</pallas_src>

<mosaic_0001>
module attributes {stable_mosaic.version = 11 : i64} {
  func.func @kernel(%arg0: i32, %arg1: i32, %arg2: memref<1x16x16x1x4xf32, #tpu.memory_space<vmem>>, %arg3: memref<1x16x16x4x1x4xf32, #tpu.memory_space<vmem>>, %arg4: memref<16x20x1x4xf32, #tpu.memory_space<vmem>>, %arg5: memref<20x16x1x4xf32, #tpu.memory_space<vmem>>) attributes {dimension_semantics = [#tpu.dimension_semantics<parallel>, #tpu.dimension_semantics<arbitrary>], iteration_bounds = array<i64: 2, 1>, scalar_prefetch = 0 : i64, scratch_operands = 2 : i64, tpu.core_type = #tpu.core_type<tc>, window_params = [{transform_indices = @transform_0, window_bounds = array<i64: 1, 16, 16, 1, 4>}, {transform_indices = @transform_1, window_bounds = array<i64: 1, 16, 16, 4, 1, 4>}]} {
    %c0_i32 = arith.constant 0 : i32
    %0 = arith.cmpi eq, %arg1, %c0_i32 : i32
    %1 = arith.extui %0 : i1 to i32
    %c0_i32_0 = arith.constant 0 : i32
    %2 = arith.cmpi ne, %1, %c0_i32_0 : i32
    scf.if %2 {
      %cst = arith.constant 0xFF800000 : f32
      %10 = vector.broadcast %cst : f32 to vector<16x2x1x4xf32>
      %c0 = arith.constant 0 : index
      %c0_27 = arith.constant 0 : index
      %c0_28 = arith.constant 0 : index
      %c0_29 = arith.constant 0 : index
      %11 = vector.load %arg4[%c0, %c0_27, %c0_28, %c0_29] : memref<16x20x1x4xf32, #tpu.memory_space<vmem>>, vector<16x2x1x4xf32>
      tpu.vector_store %arg4[%c0, %c0_27, %c0_28, %c0_29], %10 {strides = array<i32>} : memref<16x20x1x4xf32, #tpu.memory_space<vmem>>, vector<16x2x1x4xf32>,
      %cst_30 = arith.constant 0xFF800000 : f32
      %12 = vector.broadcast %cst_30 : f32 to vector<16x2x1x4xf32>
      %c0_31 = arith.constant 0 : index
      %c18 = arith.constant 18 : index
      %c0_32 = arith.constant 0 : index
      %c0_33 = arith.constant 0 : index
      %13 = vector.load %arg4[%c0_31, %c18, %c0_32, %c0_33] : memref<16x20x1x4xf32, #tpu.memory_space<vmem>>, vector<16x2x1x4xf32>
      tpu.vector_store %arg4[%c0_31, %c18, %c0_32, %c0_33], %12 {strides = array<i32>} : memref<16x20x1x4xf32, #tpu.memory_space<vmem>>, vector<16x2x1x4xf32>,
      %cst_34 = arith.constant 0xFF800000 : f32
      %14 = vector.broadcast %cst_34 : f32 to vector<2x16x1x4xf32>
      %c0_35 = arith.constant 0 : index
      %c0_36 = arith.constant 0 : index
      %c0_37 = arith.constant 0 : index
      %c0_38 = arith.constant 0 : index
      %15 = vector.load %arg5[%c0_35, %c0_36, %c0_37, %c0_38] : memref<20x16x1x4xf32, #tpu.memory_space<vmem>>, vector<2x16x1x4xf32>
      tpu.vector_store %arg5[%c0_35, %c0_36, %c0_37, %c0_38], %14 {strides = array<i32>} : memref<20x16x1x4xf32, #tpu.memory_space<vmem>>, vector<2x16x1x4xf32>,
      %cst_39 = arith.constant 0xFF800000 : f32
      %16 = vector.broadcast %cst_39 : f32 to vector<2x16x1x4xf32>
      %c18_40 = arith.constant 18 : index
      %c0_41 = arith.constant 0 : index
      %c0_42 = arith.constant 0 : index
      %c0_43 = arith.constant 0 : index
      %17 = vector.load %arg5[%c18_40, %c0_41, %c0_42, %c0_43] : memref<20x16x1x4xf32, #tpu.memory_space<vmem>>, vector<2x16x1x4xf32>
      tpu.vector_store %arg5[%c18_40, %c0_41, %c0_42, %c0_43], %16 {strides = array<i32>} : memref<20x16x1x4xf32, #tpu.memory_space<vmem>>, vector<2x16x1x4xf32>,
    } else {
    }
    %c0_i32_1 = arith.constant 0 : i32
    %c16_i32 = arith.constant 16 : i32
    %3 = arith.addi %c0_i32_1, %c16_i32 : i32
    %c1_i32 = arith.constant 1 : i32
    scf.for %arg6 = %c0_i32_1 to %3 step %c1_i32  : i32 {
      %c0 = arith.constant 0 : index
      %10 = arith.index_cast %arg6 : i32 to index
      %c0_27 = arith.constant 0 : index
      %c0_28 = arith.constant 0 : index
      %c0_29 = arith.constant 0 : index
      %11 = vector.load %arg2[%c0, %10, %c0_27, %c0_28, %c0_29] : memref<1x16x16x1x4xf32, #tpu.memory_space<vmem>>, vector<1x1x16x1x4xf32>
      %12 = vector.shape_cast %11 : vector<1x1x16x1x4xf32> to vector<16x1x4xf32>
      %13 = arith.index_cast %arg6 : i32 to index
      %c2 = arith.constant 2 : index
      %c0_30 = arith.constant 0 : index
      %c0_31 = arith.constant 0 : index
      %14 = vector.load %arg4[%13, %c2, %c0_30, %c0_31] : memref<16x20x1x4xf32, #tpu.memory_space<vmem>>, vector<1x16x1x4xf32>
      %15 = vector.shape_cast %14 : vector<1x16x1x4xf32> to vector<16x1x4xf32>
      %16 = vector.shape_cast %12 : vector<16x1x4xf32> to vector<1x16x1x4xf32>
      tpu.vector_store %arg4[%13, %c2, %c0_30, %c0_31], %16 {strides = array<i32>} : memref<16x20x1x4xf32, #tpu.memory_space<vmem>>, vector<1x16x1x4xf32>,
      %c0_32 = arith.constant 0 : index
      %17 = arith.index_cast %arg6 : i32 to index
      %c0_33 = arith.constant 0 : index
      %c3 = arith.constant 3 : index
      %c0_34 = arith.constant 0 : index
      %c0_35 = arith.constant 0 : index
      %18 = vector.load %arg3[%c0_32, %17, %c0_33, %c3, %c0_34, %c0_35] : memref<1x16x16x4x1x4xf32, #tpu.memory_space<vmem>>, vector<1x1x16x1x1x4xf32>
      %19 = vector.shape_cast %18 : vector<1x1x16x1x1x4xf32> to vector<16x1x4xf32>
      %20 = vector.shape_cast %12 : vector<16x1x4xf32> to vector<1x1x16x1x1x4xf32>
      tpu.vector_store %arg3[%c0_32, %17, %c0_33, %c3, %c0_34, %c0_35], %20 {strides = array<i32>} : memref<1x16x16x4x1x4xf32, #tpu.memory_space<vmem>>, vector<1x1x16x1x1x4xf32>,
    }
    %c16_i32_2 = arith.constant 16 : i32
    %c0_i32_3 = arith.constant 0 : i32
    %c16_i32_4 = arith.constant 16 : i32
    %4 = arith.addi %c0_i32_3, %c16_i32_4 : i32
    %c1_i32_5 = arith.constant 1 : i32
    scf.for %arg6 = %c0_i32_3 to %4 step %c1_i32_5  : i32 {
      %10 = arith.index_cast %arg6 : i32 to index
      %c0 = arith.constant 0 : index
      %c0_27 = arith.constant 0 : index
      %c0_28 = arith.constant 0 : index
      %11 = vector.load %arg4[%10, %c0, %c0_27, %c0_28] : memref<16x20x1x4xf32, #tpu.memory_space<vmem>>, vector<1x16x1x4xf32>
      %12 = vector.shape_cast %11 : vector<1x16x1x4xf32> to vector<16x1x4xf32>
      %13 = arith.index_cast %arg6 : i32 to index
      %c1 = arith.constant 1 : index
      %c0_29 = arith.constant 0 : index
      %c0_30 = arith.constant 0 : index
      %14 = vector.load %arg4[%13, %c1, %c0_29, %c0_30] : memref<16x20x1x4xf32, #tpu.memory_space<vmem>>, vector<1x16x1x4xf32>
      %15 = vector.shape_cast %14 : vector<1x16x1x4xf32> to vector<16x1x4xf32>
      %16 = arith.maximumf %12, %15 : vector<16x1x4xf32>
      %17 = arith.index_cast %arg6 : i32 to index
      %c2 = arith.constant 2 : index
      %c0_31 = arith.constant 0 : index
      %c0_32 = arith.constant 0 : index
      %18 = vector.load %arg4[%17, %c2, %c0_31, %c0_32] : memref<16x20x1x4xf32, #tpu.memory_space<vmem>>, vector<1x16x1x4xf32>
      %19 = vector.shape_cast %18 : vector<1x16x1x4xf32> to vector<16x1x4xf32>
      %20 = arith.maximumf %16, %19 : vector<16x1x4xf32>
      %21 = arith.index_cast %arg6 : i32 to index
      %c3 = arith.constant 3 : index
      %c0_33 = arith.constant 0 : index
      %c0_34 = arith.constant 0 : index
      %22 = vector.load %arg4[%21, %c3, %c0_33, %c0_34] : memref<16x20x1x4xf32, #tpu.memory_space<vmem>>, vector<1x16x1x4xf32>
      %23 = vector.shape_cast %22 : vector<1x16x1x4xf32> to vector<16x1x4xf32>
      %24 = arith.maximumf %20, %23 : vector<16x1x4xf32>
      %25 = arith.index_cast %arg6 : i32 to index
      %c4 = arith.constant 4 : index
      %c0_35 = arith.constant 0 : index
      %c0_36 = arith.constant 0 : index
      %26 = vector.load %arg4[%25, %c4, %c0_35, %c0_36] : memref<16x20x1x4xf32, #tpu.memory_space<vmem>>, vector<1x16x1x4xf32>
      %27 = vector.shape_cast %26 : vector<1x16x1x4xf32> to vector<16x1x4xf32>
      %28 = arith.maximumf %24, %27 : vector<16x1x4xf32>
      %c2_i32 = arith.constant 2 : i32
      %29 = arith.addi %arg6, %c2_i32 : i32
      %30 = arith.index_cast %29 : i32 to index
      %c0_37 = arith.constant 0 : index
      %c0_38 = arith.constant 0 : index
      %c0_39 = arith.constant 0 : index
      %31 = vector.load %arg5[%30, %c0_37, %c0_38, %c0_39] : memref<20x16x1x4xf32, #tpu.memory_space<vmem>>, vector<1x16x1x4xf32>
      %32 = vector.shape_cast %31 : vector<1x16x1x4xf32> to vector<16x1x4xf32>
      %33 = vector.shape_cast %28 : vector<16x1x4xf32> to vector<1x16x1x4xf32>
      tpu.vector_store %arg5[%30, %c0_37, %c0_38, %c0_39], %33 {strides = array<i32>} : memref<20x16x1x4xf32, #tpu.memory_space<vmem>>, vector<1x16x1x4xf32>,
    }
    %c16_i32_6 = arith.constant 16 : i32
    %c0_i32_7 = arith.constant 0 : i32
    %c16_i32_8 = arith.constant 16 : i32
    %5 = arith.addi %c0_i32_7, %c16_i32_8 : i32
    %c1_i32_9 = arith.constant 1 : i32
    scf.for %arg6 = %c0_i32_7 to %5 step %c1_i32_9  : i32 {
      %10 = arith.index_cast %arg6 : i32 to index
      %c0 = arith.constant 0 : index
      %c0_27 = arith.constant 0 : index
      %c0_28 = arith.constant 0 : index
      %11 = vector.load %arg5[%10, %c0, %c0_27, %c0_28] : memref<20x16x1x4xf32, #tpu.memory_space<vmem>>, vector<1x16x1x4xf32>
      %12 = vector.shape_cast %11 : vector<1x16x1x4xf32> to vector<16x1x4xf32>
      %c1_i32_29 = arith.constant 1 : i32
      %13 = arith.addi %arg6, %c1_i32_29 : i32
      %14 = arith.index_cast %13 : i32 to index
      %c0_30 = arith.constant 0 : index
      %c0_31 = arith.constant 0 : index
      %c0_32 = arith.constant 0 : index
      %15 = vector.load %arg5[%14, %c0_30, %c0_31, %c0_32] : memref<20x16x1x4xf32, #tpu.memory_space<vmem>>, vector<1x16x1x4xf32>
      %16 = vector.shape_cast %15 : vector<1x16x1x4xf32> to vector<16x1x4xf32>
      %17 = arith.maximumf %12, %16 : vector<16x1x4xf32>
      %c2_i32 = arith.constant 2 : i32
      %18 = arith.addi %arg6, %c2_i32 : i32
      %19 = arith.index_cast %18 : i32 to index
      %c0_33 = arith.constant 0 : index
      %c0_34 = arith.constant 0 : index
      %c0_35 = arith.constant 0 : index
      %20 = vector.load %arg5[%19, %c0_33, %c0_34, %c0_35] : memref<20x16x1x4xf32, #tpu.memory_space<vmem>>, vector<1x16x1x4xf32>
      %21 = vector.shape_cast %20 : vector<1x16x1x4xf32> to vector<16x1x4xf32>
      %22 = arith.maximumf %17, %21 : vector<16x1x4xf32>
      %c3_i32 = arith.constant 3 : i32
      %23 = arith.addi %arg6, %c3_i32 : i32
      %24 = arith.index_cast %23 : i32 to index
      %c0_36 = arith.constant 0 : index
      %c0_37 = arith.constant 0 : index
      %c0_38 = arith.constant 0 : index
      %25 = vector.load %arg5[%24, %c0_36, %c0_37, %c0_38] : memref<20x16x1x4xf32, #tpu.memory_space<vmem>>, vector<1x16x1x4xf32>
      %26 = vector.shape_cast %25 : vector<1x16x1x4xf32> to vector<16x1x4xf32>
      %27 = arith.maximumf %22, %26 : vector<16x1x4xf32>
      %c4_i32 = arith.constant 4 : i32
      %28 = arith.addi %arg6, %c4_i32 : i32
      %29 = arith.index_cast %28 : i32 to index
      %c0_39 = arith.constant 0 : index
      %c0_40 = arith.constant 0 : index
      %c0_41 = arith.constant 0 : index
      %30 = vector.load %arg5[%29, %c0_39, %c0_40, %c0_41] : memref<20x16x1x4xf32, #tpu.memory_space<vmem>>, vector<1x16x1x4xf32>
      %31 = vector.shape_cast %30 : vector<1x16x1x4xf32> to vector<16x1x4xf32>
      %32 = arith.maximumf %27, %31 : vector<16x1x4xf32>
      %c0_42 = arith.constant 0 : index
      %33 = arith.index_cast %arg6 : i32 to index
      %c0_43 = arith.constant 0 : index
      %c0_44 = arith.constant 0 : index
      %c0_45 = arith.constant 0 : index
      %c0_46 = arith.constant 0 : index
      %34 = vector.load %arg3[%c0_42, %33, %c0_43, %c0_44, %c0_45, %c0_46] : memref<1x16x16x4x1x4xf32, #tpu.memory_space<vmem>>, vector<1x1x16x1x1x4xf32>
      %35 = vector.shape_cast %34 : vector<1x1x16x1x1x4xf32> to vector<16x1x4xf32>
      %36 = vector.shape_cast %32 : vector<16x1x4xf32> to vector<1x1x16x1x1x4xf32>
      tpu.vector_store %arg3[%c0_42, %33, %c0_43, %c0_44, %c0_45, %c0_46], %36 {strides = array<i32>} : memref<1x16x16x4x1x4xf32, #tpu.memory_space<vmem>>, vector<1x1x16x1x1x4xf32>,
      %37 = arith.index_cast %arg6 : i32 to index
      %c2 = arith.constant 2 : index
      %c0_47 = arith.constant 0 : index
      %c0_48 = arith.constant 0 : index
      %38 = vector.load %arg4[%37, %c2, %c0_47, %c0_48] : memref<16x20x1x4xf32, #tpu.memory_space<vmem>>, vector<1x16x1x4xf32>
      %39 = vector.shape_cast %38 : vector<1x16x1x4xf32> to vector<16x1x4xf32>
      %40 = vector.shape_cast %32 : vector<16x1x4xf32> to vector<1x16x1x4xf32>
      tpu.vector_store %arg4[%37, %c2, %c0_47, %c0_48], %40 {strides = array<i32>} : memref<16x20x1x4xf32, #tpu.memory_space<vmem>>, vector<1x16x1x4xf32>,
    }
    %c16_i32_10 = arith.constant 16 : i32
    %c0_i32_11 = arith.constant 0 : i32
    %c16_i32_12 = arith.constant 16 : i32
    %6 = arith.addi %c0_i32_11, %c16_i32_12 : i32
    %c1_i32_13 = arith.constant 1 : i32
    scf.for %arg6 = %c0_i32_11 to %6 step %c1_i32_13  : i32 {
      %10 = arith.index_cast %arg6 : i32 to index
      %c0 = arith.constant 0 : index
      %c0_27 = arith.constant 0 : index
      %c0_28 = arith.constant 0 : index
      %11 = vector.load %arg4[%10, %c0, %c0_27, %c0_28] : memref<16x20x1x4xf32, #tpu.memory_space<vmem>>, vector<1x16x1x4xf32>
      %12 = vector.shape_cast %11 : vector<1x16x1x4xf32> to vector<16x1x4xf32>
      %13 = arith.index_cast %arg6 : i32 to index
      %c1 = arith.constant 1 : index
      %c0_29 = arith.constant 0 : index
      %c0_30 = arith.constant 0 : index
      %14 = vector.load %arg4[%13, %c1, %c0_29, %c0_30] : memref<16x20x1x4xf32, #tpu.memory_space<vmem>>, vector<1x16x1x4xf32>
      %15 = vector.shape_cast %14 : vector<1x16x1x4xf32> to vector<16x1x4xf32>
      %16 = arith.maximumf %12, %15 : vector<16x1x4xf32>
      %17 = arith.index_cast %arg6 : i32 to index
      %c2 = arith.constant 2 : index
      %c0_31 = arith.constant 0 : index
      %c0_32 = arith.constant 0 : index
      %18 = vector.load %arg4[%17, %c2, %c0_31, %c0_32] : memref<16x20x1x4xf32, #tpu.memory_space<vmem>>, vector<1x16x1x4xf32>
      %19 = vector.shape_cast %18 : vector<1x16x1x4xf32> to vector<16x1x4xf32>
      %20 = arith.maximumf %16, %19 : vector<16x1x4xf32>
      %21 = arith.index_cast %arg6 : i32 to index
      %c3 = arith.constant 3 : index
      %c0_33 = arith.constant 0 : index
      %c0_34 = arith.constant 0 : index
      %22 = vector.load %arg4[%21, %c3, %c0_33, %c0_34] : memref<16x20x1x4xf32, #tpu.memory_space<vmem>>, vector<1x16x1x4xf32>
      %23 = vector.shape_cast %22 : vector<1x16x1x4xf32> to vector<16x1x4xf32>
      %24 = arith.maximumf %20, %23 : vector<16x1x4xf32>
      %25 = arith.index_cast %arg6 : i32 to index
      %c4 = arith.constant 4 : index
      %c0_35 = arith.constant 0 : index
      %c0_36 = arith.constant 0 : index
      %26 = vector.load %arg4[%25, %c4, %c0_35, %c0_36] : memref<16x20x1x4xf32, #tpu.memory_space<vmem>>, vector<1x16x1x4xf32>
      %27 = vector.shape_cast %26 : vector<1x16x1x4xf32> to vector<16x1x4xf32>
      %28 = arith.maximumf %24, %27 : vector<16x1x4xf32>
      %c2_i32 = arith.constant 2 : i32
      %29 = arith.addi %arg6, %c2_i32 : i32
      %30 = arith.index_cast %29 : i32 to index
      %c0_37 = arith.constant 0 : index
      %c0_38 = arith.constant 0 : index
      %c0_39 = arith.constant 0 : index
      %31 = vector.load %arg5[%30, %c0_37, %c0_38, %c0_39] : memref<20x16x1x4xf32, #tpu.memory_space<vmem>>, vector<1x16x1x4xf32>
      %32 = vector.shape_cast %31 : vector<1x16x1x4xf32> to vector<16x1x4xf32>
      %33 = vector.shape_cast %28 : vector<16x1x4xf32> to vector<1x16x1x4xf32>
      tpu.vector_store %arg5[%30, %c0_37, %c0_38, %c0_39], %33 {strides = array<i32>} : memref<20x16x1x4xf32, #tpu.memory_space<vmem>>, vector<1x16x1x4xf32>,
    }
    %c16_i32_14 = arith.constant 16 : i32
    %c0_i32_15 = arith.constant 0 : i32
    %c16_i32_16 = arith.constant 16 : i32
    %7 = arith.addi %c0_i32_15, %c16_i32_16 : i32
    %c1_i32_17 = arith.constant 1 : i32
    scf.for %arg6 = %c0_i32_15 to %7 step %c1_i32_17  : i32 {
      %10 = arith.index_cast %arg6 : i32 to index
      %c0 = arith.constant 0 : index
      %c0_27 = arith.constant 0 : index
      %c0_28 = arith.constant 0 : index
      %11 = vector.load %arg5[%10, %c0, %c0_27, %c0_28] : memref<20x16x1x4xf32, #tpu.memory_space<vmem>>, vector<1x16x1x4xf32>
      %12 = vector.shape_cast %11 : vector<1x16x1x4xf32> to vector<16x1x4xf32>
      %c1_i32_29 = arith.constant 1 : i32
      %13 = arith.addi %arg6, %c1_i32_29 : i32
      %14 = arith.index_cast %13 : i32 to index
      %c0_30 = arith.constant 0 : index
      %c0_31 = arith.constant 0 : index
      %c0_32 = arith.constant 0 : index
      %15 = vector.load %arg5[%14, %c0_30, %c0_31, %c0_32] : memref<20x16x1x4xf32, #tpu.memory_space<vmem>>, vector<1x16x1x4xf32>
      %16 = vector.shape_cast %15 : vector<1x16x1x4xf32> to vector<16x1x4xf32>
      %17 = arith.maximumf %12, %16 : vector<16x1x4xf32>
      %c2_i32 = arith.constant 2 : i32
      %18 = arith.addi %arg6, %c2_i32 : i32
      %19 = arith.index_cast %18 : i32 to index
      %c0_33 = arith.constant 0 : index
      %c0_34 = arith.constant 0 : index
      %c0_35 = arith.constant 0 : index
      %20 = vector.load %arg5[%19, %c0_33, %c0_34, %c0_35] : memref<20x16x1x4xf32, #tpu.memory_space<vmem>>, vector<1x16x1x4xf32>
      %21 = vector.shape_cast %20 : vector<1x16x1x4xf32> to vector<16x1x4xf32>
      %22 = arith.maximumf %17, %21 : vector<16x1x4xf32>
      %c3_i32 = arith.constant 3 : i32
      %23 = arith.addi %arg6, %c3_i32 : i32
      %24 = arith.index_cast %23 : i32 to index
      %c0_36 = arith.constant 0 : index
      %c0_37 = arith.constant 0 : index
      %c0_38 = arith.constant 0 : index
      %25 = vector.load %arg5[%24, %c0_36, %c0_37, %c0_38] : memref<20x16x1x4xf32, #tpu.memory_space<vmem>>, vector<1x16x1x4xf32>
      %26 = vector.shape_cast %25 : vector<1x16x1x4xf32> to vector<16x1x4xf32>
      %27 = arith.maximumf %22, %26 : vector<16x1x4xf32>
      %c4_i32 = arith.constant 4 : i32
      %28 = arith.addi %arg6, %c4_i32 : i32
      %29 = arith.index_cast %28 : i32 to index
      %c0_39 = arith.constant 0 : index
      %c0_40 = arith.constant 0 : index
      %c0_41 = arith.constant 0 : index
      %30 = vector.load %arg5[%29, %c0_39, %c0_40, %c0_41] : memref<20x16x1x4xf32, #tpu.memory_space<vmem>>, vector<1x16x1x4xf32>
      %31 = vector.shape_cast %30 : vector<1x16x1x4xf32> to vector<16x1x4xf32>
      %32 = arith.maximumf %27, %31 : vector<16x1x4xf32>
      %c0_42 = arith.constant 0 : index
      %33 = arith.index_cast %arg6 : i32 to index
      %c0_43 = arith.constant 0 : index
      %c1 = arith.constant 1 : index
      %c0_44 = arith.constant 0 : index
      %c0_45 = arith.constant 0 : index
      %34 = vector.load %arg3[%c0_42, %33, %c0_43, %c1, %c0_44, %c0_45] : memref<1x16x16x4x1x4xf32, #tpu.memory_space<vmem>>, vector<1x1x16x1x1x4xf32>
      %35 = vector.shape_cast %34 : vector<1x1x16x1x1x4xf32> to vector<16x1x4xf32>
      %36 = vector.shape_cast %32 : vector<16x1x4xf32> to vector<1x1x16x1x1x4xf32>
      tpu.vector_store %arg3[%c0_42, %33, %c0_43, %c1, %c0_44, %c0_45], %36 {strides = array<i32>} : memref<1x16x16x4x1x4xf32, #tpu.memory_space<vmem>>, vector<1x1x16x1x1x4xf32>,
      %37 = arith.index_cast %arg6 : i32 to index
      %c2 = arith.constant 2 : index
      %c0_46 = arith.constant 0 : index
      %c0_47 = arith.constant 0 : index
      %38 = vector.load %arg4[%37, %c2, %c0_46, %c0_47] : memref<16x20x1x4xf32, #tpu.memory_space<vmem>>, vector<1x16x1x4xf32>
      %39 = vector.shape_cast %38 : vector<1x16x1x4xf32> to vector<16x1x4xf32>
      %40 = vector.shape_cast %32 : vector<16x1x4xf32> to vector<1x16x1x4xf32>
      tpu.vector_store %arg4[%37, %c2, %c0_46, %c0_47], %40 {strides = array<i32>} : memref<16x20x1x4xf32, #tpu.memory_space<vmem>>, vector<1x16x1x4xf32>,
    }
    %c16_i32_18 = arith.constant 16 : i32
    %c0_i32_19 = arith.constant 0 : i32
    %c16_i32_20 = arith.constant 16 : i32
    %8 = arith.addi %c0_i32_19, %c16_i32_20 : i32
    %c1_i32_21 = arith.constant 1 : i32
    scf.for %arg6 = %c0_i32_19 to %8 step %c1_i32_21  : i32 {
      %10 = arith.index_cast %arg6 : i32 to index
      %c0 = arith.constant 0 : index
      %c0_27 = arith.constant 0 : index
      %c0_28 = arith.constant 0 : index
      %11 = vector.load %arg4[%10, %c0, %c0_27, %c0_28] : memref<16x20x1x4xf32, #tpu.memory_space<vmem>>, vector<1x16x1x4xf32>
      %12 = vector.shape_cast %11 : vector<1x16x1x4xf32> to vector<16x1x4xf32>
      %13 = arith.index_cast %arg6 : i32 to index
      %c1 = arith.constant 1 : index
      %c0_29 = arith.constant 0 : index
      %c0_30 = arith.constant 0 : index
      %14 = vector.load %arg4[%13, %c1, %c0_29, %c0_30] : memref<16x20x1x4xf32, #tpu.memory_space<vmem>>, vector<1x16x1x4xf32>
      %15 = vector.shape_cast %14 : vector<1x16x1x4xf32> to vector<16x1x4xf32>
      %16 = arith.maximumf %12, %15 : vector<16x1x4xf32>
      %17 = arith.index_cast %arg6 : i32 to index
      %c2 = arith.constant 2 : index
      %c0_31 = arith.constant 0 : index
      %c0_32 = arith.constant 0 : index
      %18 = vector.load %arg4[%17, %c2, %c0_31, %c0_32] : memref<16x20x1x4xf32, #tpu.memory_space<vmem>>, vector<1x16x1x4xf32>
      %19 = vector.shape_cast %18 : vector<1x16x1x4xf32> to vector<16x1x4xf32>
      %20 = arith.maximumf %16, %19 : vector<16x1x4xf32>
      %21 = arith.index_cast %arg6 : i32 to index
      %c3 = arith.constant 3 : index
      %c0_33 = arith.constant 0 : index
      %c0_34 = arith.constant 0 : index
      %22 = vector.load %arg4[%21, %c3, %c0_33, %c0_34] : memref<16x20x1x4xf32, #tpu.memory_space<vmem>>, vector<1x16x1x4xf32>
      %23 = vector.shape_cast %22 : vector<1x16x1x4xf32> to vector<16x1x4xf32>
      %24 = arith.maximumf %20, %23 : vector<16x1x4xf32>
      %25 = arith.index_cast %arg6 : i32 to index
      %c4 = arith.constant 4 : index
      %c0_35 = arith.constant 0 : index
      %c0_36 = arith.constant 0 : index
      %26 = vector.load %arg4[%25, %c4, %c0_35, %c0_36] : memref<16x20x1x4xf32, #tpu.memory_space<vmem>>, vector<1x16x1x4xf32>
      %27 = vector.shape_cast %26 : vector<1x16x1x4xf32> to vector<16x1x4xf32>
      %28 = arith.maximumf %24, %27 : vector<16x1x4xf32>
      %c2_i32 = arith.constant 2 : i32
      %29 = arith.addi %arg6, %c2_i32 : i32
      %30 = arith.index_cast %29 : i32 to index
      %c0_37 = arith.constant 0 : index
      %c0_38 = arith.constant 0 : index
      %c0_39 = arith.constant 0 : index
      %31 = vector.load %arg5[%30, %c0_37, %c0_38, %c0_39] : memref<20x16x1x4xf32, #tpu.memory_space<vmem>>, vector<1x16x1x4xf32>
      %32 = vector.shape_cast %31 : vector<1x16x1x4xf32> to vector<16x1x4xf32>
      %33 = vector.shape_cast %28 : vector<16x1x4xf32> to vector<1x16x1x4xf32>
      tpu.vector_store %arg5[%30, %c0_37, %c0_38, %c0_39], %33 {strides = array<i32>} : memref<20x16x1x4xf32, #tpu.memory_space<vmem>>, vector<1x16x1x4xf32>,
    }
    %c16_i32_22 = arith.constant 16 : i32
    %c0_i32_23 = arith.constant 0 : i32
    %c16_i32_24 = arith.constant 16 : i32
    %9 = arith.addi %c0_i32_23, %c16_i32_24 : i32
    %c1_i32_25 = arith.constant 1 : i32
    scf.for %arg6 = %c0_i32_23 to %9 step %c1_i32_25  : i32 {
      %10 = arith.index_cast %arg6 : i32 to index
      %c0 = arith.constant 0 : index
      %c0_27 = arith.constant 0 : index
      %c0_28 = arith.constant 0 : index
      %11 = vector.load %arg5[%10, %c0, %c0_27, %c0_28] : memref<20x16x1x4xf32, #tpu.memory_space<vmem>>, vector<1x16x1x4xf32>
      %12 = vector.shape_cast %11 : vector<1x16x1x4xf32> to vector<16x1x4xf32>
      %c1_i32_29 = arith.constant 1 : i32
      %13 = arith.addi %arg6, %c1_i32_29 : i32
      %14 = arith.index_cast %13 : i32 to index
      %c0_30 = arith.constant 0 : index
      %c0_31 = arith.constant 0 : index
      %c0_32 = arith.constant 0 : index
      %15 = vector.load %arg5[%14, %c0_30, %c0_31, %c0_32] : memref<20x16x1x4xf32, #tpu.memory_space<vmem>>, vector<1x16x1x4xf32>
      %16 = vector.shape_cast %15 : vector<1x16x1x4xf32> to vector<16x1x4xf32>
      %17 = arith.maximumf %12, %16 : vector<16x1x4xf32>
      %c2_i32 = arith.constant 2 : i32
      %18 = arith.addi %arg6, %c2_i32 : i32
      %19 = arith.index_cast %18 : i32 to index
      %c0_33 = arith.constant 0 : index
      %c0_34 = arith.constant 0 : index
      %c0_35 = arith.constant 0 : index
      %20 = vector.load %arg5[%19, %c0_33, %c0_34, %c0_35] : memref<20x16x1x4xf32, #tpu.memory_space<vmem>>, vector<1x16x1x4xf32>
      %21 = vector.shape_cast %20 : vector<1x16x1x4xf32> to vector<16x1x4xf32>
      %22 = arith.maximumf %17, %21 : vector<16x1x4xf32>
      %c3_i32 = arith.constant 3 : i32
      %23 = arith.addi %arg6, %c3_i32 : i32
      %24 = arith.index_cast %23 : i32 to index
      %c0_36 = arith.constant 0 : index
      %c0_37 = arith.constant 0 : index
      %c0_38 = arith.constant 0 : index
      %25 = vector.load %arg5[%24, %c0_36, %c0_37, %c0_38] : memref<20x16x1x4xf32, #tpu.memory_space<vmem>>, vector<1x16x1x4xf32>
      %26 = vector.shape_cast %25 : vector<1x16x1x4xf32> to vector<16x1x4xf32>
      %27 = arith.maximumf %22, %26 : vector<16x1x4xf32>
      %c4_i32 = arith.constant 4 : i32
      %28 = arith.addi %arg6, %c4_i32 : i32
      %29 = arith.index_cast %28 : i32 to index
      %c0_39 = arith.constant 0 : index
      %c0_40 = arith.constant 0 : index
      %c0_41 = arith.constant 0 : index
      %30 = vector.load %arg5[%29, %c0_39, %c0_40, %c0_41] : memref<20x16x1x4xf32, #tpu.memory_space<vmem>>, vector<1x16x1x4xf32>
      %31 = vector.shape_cast %30 : vector<1x16x1x4xf32> to vector<16x1x4xf32>
      %32 = arith.maximumf %27, %31 : vector<16x1x4xf32>
      %c0_42 = arith.constant 0 : index
      %33 = arith.index_cast %arg6 : i32 to index
      %c0_43 = arith.constant 0 : index
      %c2 = arith.constant 2 : index
      %c0_44 = arith.constant 0 : index
      %c0_45 = arith.constant 0 : index
      %34 = vector.load %arg3[%c0_42, %33, %c0_43, %c2, %c0_44, %c0_45] : memref<1x16x16x4x1x4xf32, #tpu.memory_space<vmem>>, vector<1x1x16x1x1x4xf32>
      %35 = vector.shape_cast %34 : vector<1x1x16x1x1x4xf32> to vector<16x1x4xf32>
      %36 = vector.shape_cast %32 : vector<16x1x4xf32> to vector<1x1x16x1x1x4xf32>
      tpu.vector_store %arg3[%c0_42, %33, %c0_43, %c2, %c0_44, %c0_45], %36 {strides = array<i32>} : memref<1x16x16x4x1x4xf32, #tpu.memory_space<vmem>>, vector<1x1x16x1x1x4xf32>,
    }
    %c16_i32_26 = arith.constant 16 : i32
    return
  }
  func.func @transform_0(%arg0: i32, %arg1: i32) -> (i32, i32, i32, i32, i32) {
    %c0_i32 = arith.constant 0 : i32
    %c0_i32_0 = arith.constant 0 : i32
    %c0_i32_1 = arith.constant 0 : i32
    %c0_i32_2 = arith.constant 0 : i32
    return %arg0, %c0_i32, %c0_i32_0, %arg1, %c0_i32_1 : i32, i32, i32, i32, i32
  }
  func.func @transform_1(%arg0: i32, %arg1: i32) -> (i32, i32, i32, i32, i32, i32) {
    %c0_i32 = arith.constant 0 : i32
    %c0_i32_0 = arith.constant 0 : i32
    %c0_i32_1 = arith.constant 0 : i32
    %c0_i32_2 = arith.constant 0 : i32
    %c0_i32_3 = arith.constant 0 : i32
    return %arg0, %c0_i32, %c0_i32_0, %c0_i32_1, %arg1, %c0_i32_2 : i32, i32, i32, i32, i32, i32
  }
}

</mosaic_0001>

<llo_original>
// kernel: tpu_custom_call.1
$region0: #{tpu_custom_call.1}
  #allocation0 [shape = 'u32[]', space=smem, size = 0x4, offset = 0x4, fixed_abs, tag = 'smem constant byte address 0x4 - core index']
  #allocation1 [shape = 'u32[144,128]{1,0:T(1,128)}', space=vmem, size = 0x12000, scoped, tag = 'internal scratch']
  #allocation2 [shape = 'f32[16,20,1,4]{3,2,1,0:T(1,128)}', space=vmem, size = 0x28000, scoped, tag = 'scratch operand']
  #allocation3 [shape = 'f32[20,16,1,4]{3,2,1,0:T(1,128)}', space=vmem, size = 0x28000, scoped, tag = 'scratch operand']
  %s0 = inlined_call_operand.vmem [shape: f32[2,16,16,1,4], index: 0, kind: input, shape index: {}]
  %s1 = inlined_call_operand.vmem [shape: f32[2,16,16,4,1,4], index: 1, kind: output, shape index: {}]
  %s2 = sld [smem:[#allocation0]]
  $region90: #{tpu_custom_call.1} parent=0
    _
  %s4 = ssub.s32 1, %s2
  %s5 = scalar_select 0, %s4, %s2
  loop: start=0, step=1, limit=4
  $region2: #{tpu_custom_call.1} parent=0 // loop_pre_header
    _
  $region3: #{tpu_custom_call.1} parent=0 // loop_header
    %s7 = sphi 0, %s11
    %p8 = scmp.ge.s32.totalorder %s7, 4
    %s14 = sphi 0, %s26
    %s15 = sphi 0, %s22
    %s16 = sphi 0, %s14
    %s17 = sphi 0, %s15
    %s18 = sphi 0, %s16
    %s19 = sphi 0, %s17
    %s31 = sphi 0, %s33
    %s34 = sphi 0, %s31
    %s35 = sphi 0, %s34
    %s51 = sphi 0, %s35
    %s59 = sphi 0, %s61
    %s62 = sphi 0, %s59
    %s63 = sphi 0, %s62
    %s79 = sphi 0, %s63
  $region4: #{tpu_custom_call.1} parent=0 // loop_header_branch
    %10 = sbr.rel (%p8) target = $region8
  $region5: #{tpu_custom_call.1} parent=0 // loop_body
    %s12 = ssub.s32 %s7, 1
    %s13 = ssub.s32 %s7, 2
    %s20 = sadd.s32 1, %s15
    %p21 = scmp.ge.s32.totalorder %s20, 1
    %s22 = scalar_select %p21, 0, %s20
    %s23 = sadd.s32 1, %s14
    %s24 = scalar_select %p21, %s23, %s14
    %p25 = scmp.ge.s32.totalorder %s24, 2
    %s26 = scalar_select %p25, 0, %s24
    %s27 = ssub.s32 %s14, %s26
    %s28 = ssub.s32 %s15, %s22
    %s29 = sor.u32 %s27, %s28
    %p30 = scmp.eq.s32.totalorder %s29, 0
    %s32 = sadd.s32 %s31, 1
    %s33 = scalar_select %p30, %s31, %s32
    %p36 = pneg %p30
    %p37 = scmp.eq.s32.totalorder %s7, 1
    %p38 = por %p36, %p37
    %p39 = scmp.ne.s32.totalorder %s31, %s34
    %p40 = scmp.eq.s32.totalorder %s7, 0
    %p41 = por %p39, %p40
    %p42 = scmp.ne.s32.totalorder %s31, %s34
    %p43 = scmp.eq.s32.totalorder %s12, 1
    %p44 = por %p42, %p43
    %p45 = scmp.ne.s32.totalorder %s34, %s35
    %p46 = scmp.eq.s32.totalorder %s12, 0
    %p47 = por %p45, %p46
    %p48 = scmp.ne.s32.totalorder %s34, %s35
    %p49 = scmp.eq.s32.totalorder %s13, 1
    %p50 = por %p48, %p49
    %p52 = scmp.ne.s32.totalorder %s35, %s51
    %p53 = scmp.eq.s32.totalorder %s13, 0
    %p54 = por %p52, %p53
    %s55 = ssub.s32 %s14, %s26
    %s56 = ssub.s32 %s15, %s22
    %s57 = sor.u32 %s55, %s56
    %p58 = scmp.eq.s32.totalorder %s57, 0
    %s60 = sadd.s32 %s59, 1
    %s61 = scalar_select %p58, %s59, %s60
    %p64 = pneg %p58
    %p65 = scmp.eq.s32.totalorder %s7, 1
    %p66 = por %p64, %p65
    %p67 = scmp.ne.s32.totalorder %s59, %s62
    %p68 = scmp.eq.s32.totalorder %s7, 0
    %p69 = por %p67, %p68
    %p70 = scmp.ne.s32.totalorder %s59, %s62
    %p71 = scmp.eq.s32.totalorder %s12, 1
    %p72 = por %p70, %p71
    %p73 = scmp.ne.s32.totalorder %s62, %s63
    %p74 = scmp.eq.s32.totalorder %s12, 0
    %p75 = por %p73, %p74
    %p76 = scmp.ne.s32.totalorder %s62, %s63
    %p77 = scmp.eq.s32.totalorder %s13, 1
    %p78 = por %p76, %p77
    %p80 = scmp.ne.s32.totalorder %s63, %s79
    %p81 = scmp.eq.s32.totalorder %s13, 0
    %p82 = por %p80, %p81
    %p83 = scmp.le.s32.totalorder 1, %s7
    %p84 = scmp.lt.s32.totalorder %s7, 3
    %p85 = pnand %p83, %p84
    %p86 = pneg %p85
    // Predicated region
    $region9: #{tpu_custom_call.1} parent=5 // pred_check
      _
    $region10: #{tpu_custom_call.1} parent=5 // pred_check_branch
      %88 = sbr.rel (%p85) target = $region12
    $region11: #{tpu_custom_call.1} parent=5 // pred_region
      %s89 = ssub.s32 %s7, 1
    $region12: #{tpu_custom_call.1} parent=5 // pred_fallthru
      _
    %p90 = scmp.lt.s32.totalorder %s7, 2
    // Predicated region
    $region13: #{tpu_custom_call.1} parent=5 // pred_check
      %p91 = pneg %p90
    $region14: #{tpu_custom_call.1} parent=5 // pred_check_branch
      %93 = sbr.rel (%p91) target = $region16
    $region15: #{tpu_custom_call.1} parent=5 // pred_region
      // Predicated region
      $region17: #{tpu_custom_call.1} parent=15 // pred_check
        %p94 = pneg %p41
      $region18: #{tpu_custom_call.1} parent=15 // pred_check_branch
        %96 = sbr.rel (%p94) target = $region20
      $region19: #{tpu_custom_call.1} parent=15 // pred_region
        %p97 = scmp.lt.s32.totalorder %s14, 1
        %s98 = scalar_select %p97, %s14, 1
        %p99 = scmp.lt.s32.totalorder %s15, 0
        %s100 = scalar_select %p99, %s15, 0
        %s101 = smul.addr %s98, 256
        %s102 = sadd.s32 %s100, %s101
        %s103 = scalar_lea.vmem %s0, %s102
      $region20: #{tpu_custom_call.1} parent=15 // pred_fallthru
        _
    $region16: #{tpu_custom_call.1} parent=5 // pred_fallthru
      _
    %p104 = scmp.le.s32.totalorder 1, %s7
    %p105 = scmp.lt.s32.totalorder %s7, 3
    %p106 = pnand %p104, %p105
    %p107 = pneg %p106
    // Predicated region
    $region21: #{tpu_custom_call.1} parent=5 // pred_check
      _
    $region22: #{tpu_custom_call.1} parent=5 // pred_check_branch
      %109 = sbr.rel (%p106) target = $region24
    $region23: #{tpu_custom_call.1} parent=5 // pred_region
      %s110 = ssub.s32 %s7, 1
      %p111 = scmp.lt.s32.totalorder %s16, 1
      %s112 = scalar_select %p111, %s16, 1
      %p113 = scmp.lt.s32.totalorder %s17, 0
      %s114 = scalar_select %p113, %s17, 0
      %s115 = smul.addr %s112, 256
      %s116 = sadd.s32 %s114, %s115
      %s117 = scalar_lea.vmem %s0, %s116
      %p118 = pneg %p47
      %p119 = pneg %p44
      %p120 = pneg %p75
      %p121 = pneg %p72
      %p122 = scmp.lt.s32.totalorder %s16, 1
      %s123 = scalar_select %p122, %s16, 1
      %p124 = scmp.lt.s32.totalorder %s17, 0
      %s125 = scalar_select %p124, %s17, 0
      %s126 = smul.addr %s123, 1024
      %s127 = sadd.s32 %s125, %s126
      %s128 = scalar_lea.vmem %s1, %s127
      %p129 = scmp.lt.s32.totalorder %s16, 1
      %s130 = scalar_select %p129, %s16, 1
      %p131 = scmp.lt.s32.totalorder %s17, 0
      %s132 = scalar_select %p131, %s17, 0
      %s133 = smul.addr %s130, 256
      %s134 = sadd.s32 %s132, %s133
      %s135 = scalar_lea.vmem %s0, %s134
      %p136 = scmp.lt.s32.totalorder %s16, 1
      %s137 = scalar_select %p136, %s16, 1
      %p138 = scmp.lt.s32.totalorder %s17, 0
      %s139 = scalar_select %p138, %s17, 0
      %s140 = smul.addr %s137, 1024
      %s141 = sadd.s32 %s139, %s140
      %s142 = scalar_lea.vmem %s1, %s141
      %p143 = scmp.eq.s32.totalorder %s17, 0
      // Predicated region
      $region25: #{tpu_custom_call.1} parent=23 // pred_check
        %p144 = pneg %p143
      $region26: #{tpu_custom_call.1} parent=23 // pred_check_branch
        %146 = sbr.rel (%p144) target = $region28
      $region27: #{tpu_custom_call.1} parent=23 // pred_region
        %vm147 = vcmask 24576
        %148 = vst.msk [vmem:[#allocation2] sm:$0x1] %vm147, -inf
        %149 = vst.msk [vmem:[#allocation2 + $0x1] sm:$0x1] %vm147, -inf
        %150 = vst.msk [vmem:[#allocation2 + $0x14] sm:$0x1] %vm147, -inf
        %151 = vst.msk [vmem:[#allocation2 + $0x15] sm:$0x1] %vm147, -inf
        %152 = vst.msk [vmem:[#allocation2 + $0x28] sm:$0x1] %vm147, -inf
        %153 = vst.msk [vmem:[#allocation2 + $0x29] sm:$0x1] %vm147, -inf
        %154 = vst.msk [vmem:[#allocation2 + $0x3c] sm:$0x1] %vm147, -inf
        %155 = vst.msk [vmem:[#allocation2 + $0x3d] sm:$0x1] %vm147, -inf
        %156 = vst.msk [vmem:[#allocation2 + $0x50] sm:$0x1] %vm147, -inf
        %157 = vst.msk [vmem:[#allocation2 + $0x51] sm:$0x1] %vm147, -inf
        %158 = vst.msk [vmem:[#allocation2 + $0x64] sm:$0x1] %vm147, -inf
        %159 = vst.msk [vmem:[#allocation2 + $0x65] sm:$0x1] %vm147, -inf
        %160 = vst.msk [vmem:[#allocation2 + $0x78] sm:$0x1] %vm147, -inf
        %161 = vst.msk [vmem:[#allocation2 + $0x79] sm:$0x1] %vm147, -inf
        %162 = vst.msk [vmem:[#allocation2 + $0x8c] sm:$0x1] %vm147, -inf
        %163 = vst.msk [vmem:[#allocation2 + $0x8d] sm:$0x1] %vm147, -inf
        %164 = vst.msk [vmem:[#allocation2 + $0xa0] sm:$0x1] %vm147, -inf
        %165 = vst.msk [vmem:[#allocation2 + $0xa1] sm:$0x1] %vm147, -inf
        %166 = vst.msk [vmem:[#allocation2 + $0xb4] sm:$0x1] %vm147, -inf
        %167 = vst.msk [vmem:[#allocation2 + $0xb5] sm:$0x1] %vm147, -inf
        %168 = vst.msk [vmem:[#allocation2 + $0xc8] sm:$0x1] %vm147, -inf
        %169 = vst.msk [vmem:[#allocation2 + $0xc9] sm:$0x1] %vm147, -inf
        %170 = vst.msk [vmem:[#allocation2 + $0xdc] sm:$0x1] %vm147, -inf
        %171 = vst.msk [vmem:[#allocation2 + $0xdd] sm:$0x1] %vm147, -inf
        %172 = vst.msk [vmem:[#allocation2 + $0xf0] sm:$0x1] %vm147, -inf
        %173 = vst.msk [vmem:[#allocation2 + $0xf1] sm:$0x1] %vm147, -inf
        %174 = vst.msk [vmem:[#allocation2 + $0x104] sm:$0x1] %vm147, -inf
        %175 = vst.msk [vmem:[#allocation2 + $0x105] sm:$0x1] %vm147, -inf
        %176 = vst.msk [vmem:[#allocation2 + $0x118] sm:$0x1] %vm147, -inf
        %177 = vst.msk [vmem:[#allocation2 + $0x119] sm:$0x1] %vm147, -inf
        %178 = vst.msk [vmem:[#allocation2 + $0x12c] sm:$0x1] %vm147, -inf
        %179 = vst.msk [vmem:[#allocation2 + $0x12d] sm:$0x1] %vm147, -inf
        %s180 = scalar_lea.vmem [#allocation2], 18
        %181 = vst.msk [vmem:[%s180] sm:$0x1] %vm147, -inf
        %182 = vst.msk [vmem:[%s180 + $0x1] sm:$0x1] %vm147, -inf
        %183 = vst.msk [vmem:[%s180 + $0x14] sm:$0x1] %vm147, -inf
        %184 = vst.msk [vmem:[%s180 + $0x15] sm:$0x1] %vm147, -inf
        %185 = vst.msk [vmem:[%s180 + $0x28] sm:$0x1] %vm147, -inf
        %186 = vst.msk [vmem:[%s180 + $0x29] sm:$0x1] %vm147, -inf
        %187 = vst.msk [vmem:[%s180 + $0x3c] sm:$0x1] %vm147, -inf
        %188 = vst.msk [vmem:[%s180 + $0x3d] sm:$0x1] %vm147, -inf
        %189 = vst.msk [vmem:[%s180 + $0x50] sm:$0x1] %vm147, -inf
        %190 = vst.msk [vmem:[%s180 + $0x51] sm:$0x1] %vm147, -inf
        %191 = vst.msk [vmem:[%s180 + $0x64] sm:$0x1] %vm147, -inf
        %192 = vst.msk [vmem:[%s180 + $0x65] sm:$0x1] %vm147, -inf
        %193 = vst.msk [vmem:[%s180 + $0x78] sm:$0x1] %vm147, -inf
        %194 = vst.msk [vmem:[%s180 + $0x79] sm:$0x1] %vm147, -inf
        %195 = vst.msk [vmem:[%s180 + $0x8c] sm:$0x1] %vm147, -inf
        %196 = vst.msk [vmem:[%s180 + $0x8d] sm:$0x1] %vm147, -inf
        %197 = vst.msk [vmem:[%s180 + $0xa0] sm:$0x1] %vm147, -inf
        %198 = vst.msk [vmem:[%s180 + $0xa1] sm:$0x1] %vm147, -inf
        %199 = vst.msk [vmem:[%s180 + $0xb4] sm:$0x1] %vm147, -inf
        %200 = vst.msk [vmem:[%s180 + $0xb5] sm:$0x1] %vm147, -inf
        %201 = vst.msk [vmem:[%s180 + $0xc8] sm:$0x1] %vm147, -inf
        %202 = vst.msk [vmem:[%s180 + $0xc9] sm:$0x1] %vm147, -inf
        %203 = vst.msk [vmem:[%s180 + $0xdc] sm:$0x1] %vm147, -inf
        %204 = vst.msk [vmem:[%s180 + $0xdd] sm:$0x1] %vm147, -inf
        %205 = vst.msk [vmem:[%s180 + $0xf0] sm:$0x1] %vm147, -inf
        %206 = vst.msk [vmem:[%s180 + $0xf1] sm:$0x1] %vm147, -inf
        %207 = vst.msk [vmem:[%s180 + $0x104] sm:$0x1] %vm147, -inf
        %208 = vst.msk [vmem:[%s180 + $0x105] sm:$0x1] %vm147, -inf
        %209 = vst.msk [vmem:[%s180 + $0x118] sm:$0x1] %vm147, -inf
        %210 = vst.msk [vmem:[%s180 + $0x119] sm:$0x1] %vm147, -inf
        %211 = vst.msk [vmem:[%s180 + $0x12c] sm:$0x1] %vm147, -inf
        %212 = vst.msk [vmem:[%s180 + $0x12d] sm:$0x1] %vm147, -inf
        %213 = vst.msk [vmem:[#allocation3] sm:$0x1] %vm147, -inf
        %214 = vst.msk [vmem:[#allocation3 + $0x1] sm:$0x1] %vm147, -inf
        %215 = vst.msk [vmem:[#allocation3 + $0x2] sm:$0x1] %vm147, -inf
        %216 = vst.msk [vmem:[#allocation3 + $0x3] sm:$0x1] %vm147, -inf
        %217 = vst.msk [vmem:[#allocation3 + $0x4] sm:$0x1] %vm147, -inf
        %218 = vst.msk [vmem:[#allocation3 + $0x5] sm:$0x1] %vm147, -inf
        %219 = vst.msk [vmem:[#allocation3 + $0x6] sm:$0x1] %vm147, -inf
        %220 = vst.msk [vmem:[#allocation3 + $0x7] sm:$0x1] %vm147, -inf
        %221 = vst.msk [vmem:[#allocation3 + $0x8] sm:$0x1] %vm147, -inf
        %222 = vst.msk [vmem:[#allocation3 + $0x9] sm:$0x1] %vm147, -inf
        %223 = vst.msk [vmem:[#allocation3 + $0xa] sm:$0x1] %vm147, -inf
        %224 = vst.msk [vmem:[#allocation3 + $0xb] sm:$0x1] %vm147, -inf
        %225 = vst.msk [vmem:[#allocation3 + $0xc] sm:$0x1] %vm147, -inf
        %226 = vst.msk [vmem:[#allocation3 + $0xd] sm:$0x1] %vm147, -inf
        %227 = vst.msk [vmem:[#allocation3 + $0xe] sm:$0x1] %vm147, -inf
        %228 = vst.msk [vmem:[#allocation3 + $0xf] sm:$0x1] %vm147, -inf
        %229 = vst.msk [vmem:[#allocation3 + $0x10] sm:$0x1] %vm147, -inf
        %230 = vst.msk [vmem:[#allocation3 + $0x11] sm:$0x1] %vm147, -inf
        %231 = vst.msk [vmem:[#allocation3 + $0x12] sm:$0x1] %vm147, -inf
        %232 = vst.msk [vmem:[#allocation3 + $0x13] sm:$0x1] %vm147, -inf
        %233 = vst.msk [vmem:[#allocation3 + $0x14] sm:$0x1] %vm147, -inf
        %234 = vst.msk [vmem:[#allocation3 + $0x15] sm:$0x1] %vm147, -inf
        %235 = vst.msk [vmem:[#allocation3 + $0x16] sm:$0x1] %vm147, -inf
        %236 = vst.msk [vmem:[#allocation3 + $0x17] sm:$0x1] %vm147, -inf
        %237 = vst.msk [vmem:[#allocation3 + $0x18] sm:$0x1] %vm147, -inf
        %238 = vst.msk [vmem:[#allocation3 + $0x19] sm:$0x1] %vm147, -inf
        %239 = vst.msk [vmem:[#allocation3 + $0x1a] sm:$0x1] %vm147, -inf
        %240 = vst.msk [vmem:[#allocation3 + $0x1b] sm:$0x1] %vm147, -inf
        %241 = vst.msk [vmem:[#allocation3 + $0x1c] sm:$0x1] %vm147, -inf
        %242 = vst.msk [vmem:[#allocation3 + $0x1d] sm:$0x1] %vm147, -inf
        %243 = vst.msk [vmem:[#allocation3 + $0x1e] sm:$0x1] %vm147, -inf
        %244 = vst.msk [vmem:[#allocation3 + $0x1f] sm:$0x1] %vm147, -inf
        %s245 = scalar_lea.vmem [#allocation3], 288
        %246 = vst.msk [vmem:[%s245] sm:$0x1] %vm147, -inf
        %247 = vst.msk [vmem:[%s245 + $0x1] sm:$0x1] %vm147, -inf
        %248 = vst.msk [vmem:[%s245 + $0x2] sm:$0x1] %vm147, -inf
        %249 = vst.msk [vmem:[%s245 + $0x3] sm:$0x1] %vm147, -inf
        %250 = vst.msk [vmem:[%s245 + $0x4] sm:$0x1] %vm147, -inf
        %251 = vst.msk [vmem:[%s245 + $0x5] sm:$0x1] %vm147, -inf
        %252 = vst.msk [vmem:[%s245 + $0x6] sm:$0x1] %vm147, -inf
        %253 = vst.msk [vmem:[%s245 + $0x7] sm:$0x1] %vm147, -inf
        %254 = vst.msk [vmem:[%s245 + $0x8] sm:$0x1] %vm147, -inf
        %255 = vst.msk [vmem:[%s245 + $0x9] sm:$0x1] %vm147, -inf
        %256 = vst.msk [vmem:[%s245 + $0xa] sm:$0x1] %vm147, -inf
        %257 = vst.msk [vmem:[%s245 + $0xb] sm:$0x1] %vm147, -inf
        %258 = vst.msk [vmem:[%s245 + $0xc] sm:$0x1] %vm147, -inf
        %259 = vst.msk [vmem:[%s245 + $0xd] sm:$0x1] %vm147, -inf
        %260 = vst.msk [vmem:[%s245 + $0xe] sm:$0x1] %vm147, -inf
        %261 = vst.msk [vmem:[%s245 + $0xf] sm:$0x1] %vm147, -inf
        %262 = vst.msk [vmem:[%s245 + $0x10] sm:$0x1] %vm147, -inf
        %263 = vst.msk [vmem:[%s245 + $0x11] sm:$0x1] %vm147, -inf
        %264 = vst.msk [vmem:[%s245 + $0x12] sm:$0x1] %vm147, -inf
        %265 = vst.msk [vmem:[%s245 + $0x13] sm:$0x1] %vm147, -inf
        %266 = vst.msk [vmem:[%s245 + $0x14] sm:$0x1] %vm147, -inf
        %267 = vst.msk [vmem:[%s245 + $0x15] sm:$0x1] %vm147, -inf
        %268 = vst.msk [vmem:[%s245 + $0x16] sm:$0x1] %vm147, -inf
        %269 = vst.msk [vmem:[%s245 + $0x17] sm:$0x1] %vm147, -inf
        %270 = vst.msk [vmem:[%s245 + $0x18] sm:$0x1] %vm147, -inf
        %271 = vst.msk [vmem:[%s245 + $0x19] sm:$0x1] %vm147, -inf
        %272 = vst.msk [vmem:[%s245 + $0x1a] sm:$0x1] %vm147, -inf
        %273 = vst.msk [vmem:[%s245 + $0x1b] sm:$0x1] %vm147, -inf
        %274 = vst.msk [vmem:[%s245 + $0x1c] sm:$0x1] %vm147, -inf
        %275 = vst.msk [vmem:[%s245 + $0x1d] sm:$0x1] %vm147, -inf
        %276 = vst.msk [vmem:[%s245 + $0x1e] sm:$0x1] %vm147, -inf
        %277 = vst.msk [vmem:[%s245 + $0x1f] sm:$0x1] %vm147, -inf
      $region28: #{tpu_custom_call.1} parent=23 // pred_fallthru
        _
      loop: start=0, step=1, limit=16
      $region29: #{tpu_custom_call.1} parent=23 // loop_pre_header
        _
      $region30: #{tpu_custom_call.1} parent=23 // loop_header
        %s279 = sphi 0, %s283
        %p280 = scmp.ge.s32.totalorder %s279, 16
      $region31: #{tpu_custom_call.1} parent=23 // loop_header_branch
        %282 = sbr.rel (%p280) target = $region35
      $region32: #{tpu_custom_call.1} parent=23 // loop_body
        %s284 = smul.u32 %s279, 16
        %s285 = scalar_lea.vmem %s135, %s284
        %v286 = vld [vmem:[%s285] sm:$0x1]
        %v287 = vld [vmem:[%s285 + $0x1] sm:$0x1]
        %v288 = vld [vmem:[%s285 + $0x2] sm:$0x1]
        %v289 = vld [vmem:[%s285 + $0x3] sm:$0x1]
        %v290 = vld [vmem:[%s285 + $0x4] sm:$0x1]
        %v291 = vld [vmem:[%s285 + $0x5] sm:$0x1]
        %v292 = vld [vmem:[%s285 + $0x6] sm:$0x1]
        %v293 = vld [vmem:[%s285 + $0x7] sm:$0x1]
        %v294 = vld [vmem:[%s285 + $0x8] sm:$0x1]
        %v295 = vld [vmem:[%s285 + $0x9] sm:$0x1]
        %v296 = vld [vmem:[%s285 + $0xa] sm:$0x1]
        %v297 = vld [vmem:[%s285 + $0xb] sm:$0x1]
        %v298 = vld [vmem:[%s285 + $0xc] sm:$0x1]
        %v299 = vld [vmem:[%s285 + $0xd] sm:$0x1]
        %v300 = vld [vmem:[%s285 + $0xe] sm:$0x1]
        %v301 = vld [vmem:[%s285 + $0xf] sm:$0x1]
        %s302 = smul.u32 %s279, 20
        %s303 = sadd.s32 2, %s302
        %s304 = scalar_lea.vmem [#allocation2], %s303
        %vm305 = vcmask 24576
        %306 = vst.msk [vmem:[%s304] sm:$0x1] %vm305, %v286
        %307 = vst.msk [vmem:[%s304 + $0x1] sm:$0x1] %vm305, %v287
        %308 = vst.msk [vmem:[%s304 + $0x2] sm:$0x1] %vm305, %v288
        %309 = vst.msk [vmem:[%s304 + $0x3] sm:$0x1] %vm305, %v289
        %310 = vst.msk [vmem:[%s304 + $0x4] sm:$0x1] %vm305, %v290
        %311 = vst.msk [vmem:[%s304 + $0x5] sm:$0x1] %vm305, %v291
        %312 = vst.msk [vmem:[%s304 + $0x6] sm:$0x1] %vm305, %v292
        %313 = vst.msk [vmem:[%s304 + $0x7] sm:$0x1] %vm305, %v293
        %314 = vst.msk [vmem:[%s304 + $0x8] sm:$0x1] %vm305, %v294
        %315 = vst.msk [vmem:[%s304 + $0x9] sm:$0x1] %vm305, %v295
        %316 = vst.msk [vmem:[%s304 + $0xa] sm:$0x1] %vm305, %v296
        %317 = vst.msk [vmem:[%s304 + $0xb] sm:$0x1] %vm305, %v297
        %318 = vst.msk [vmem:[%s304 + $0xc] sm:$0x1] %vm305, %v298
        %319 = vst.msk [vmem:[%s304 + $0xd] sm:$0x1] %vm305, %v299
        %320 = vst.msk [vmem:[%s304 + $0xe] sm:$0x1] %vm305, %v300
        %321 = vst.msk [vmem:[%s304 + $0xf] sm:$0x1] %vm305, %v301
        %s322 = smul.u32 %s279, 64
        %s323 = sadd.s32 3, %s322
        %s324 = scalar_lea.vmem %s142, %s323
        %325 = vst.msk [vmem:[%s324] sm:$0x1] %vm305, %v286
        %326 = vst.msk [vmem:[%s324 + $0x4] sm:$0x1] %vm305, %v287
        %327 = vst.msk [vmem:[%s324 + $0x8] sm:$0x1] %vm305, %v288
        %328 = vst.msk [vmem:[%s324 + $0xc] sm:$0x1] %vm305, %v289
        %329 = vst.msk [vmem:[%s324 + $0x10] sm:$0x1] %vm305, %v290
        %330 = vst.msk [vmem:[%s324 + $0x14] sm:$0x1] %vm305, %v291
        %331 = vst.msk [vmem:[%s324 + $0x18] sm:$0x1] %vm305, %v292
        %332 = vst.msk [vmem:[%s324 + $0x1c] sm:$0x1] %vm305, %v293
        %333 = vst.msk [vmem:[%s324 + $0x20] sm:$0x1] %vm305, %v294
        %334 = vst.msk [vmem:[%s324 + $0x24] sm:$0x1] %vm305, %v295
        %335 = vst.msk [vmem:[%s324 + $0x28] sm:$0x1] %vm305, %v296
        %336 = vst.msk [vmem:[%s324 + $0x2c] sm:$0x1] %vm305, %v297
        %337 = vst.msk [vmem:[%s324 + $0x30] sm:$0x1] %vm305, %v298
        %338 = vst.msk [vmem:[%s324 + $0x34] sm:$0x1] %vm305, %v299
        %339 = vst.msk [vmem:[%s324 + $0x38] sm:$0x1] %vm305, %v300
        %340 = vst.msk [vmem:[%s324 + $0x3c] sm:$0x1] %vm305, %v301
      $region33: #{tpu_custom_call.1} parent=23 // loop_footer
        %s283 = sadd.s32 1, %s279
      $region34: #{tpu_custom_call.1} parent=23 // loop_footer_branch
        %278 = sbr.rel target = $region30
      $region35: #{tpu_custom_call.1} parent=23 // loop_exit
        _
      loop: start=0, step=1, limit=16
      $region36: #{tpu_custom_call.1} parent=23 // loop_pre_header
        _
      $region37: #{tpu_custom_call.1} parent=23 // loop_header
        %s342 = sphi 0, %s346
        %p343 = scmp.ge.s32.totalorder %s342, 16
      $region38: #{tpu_custom_call.1} parent=23 // loop_header_branch
        %345 = sbr.rel (%p343) target = $region42
      $region39: #{tpu_custom_call.1} parent=23 // loop_body
        %s347 = smul.u32 %s342, 20
        %s348 = scalar_lea.vmem [#allocation2], %s347
        %v349 = vld [vmem:[%s348] sm:$0x1]
        %v350 = vld [vmem:[%s348 + $0x1] sm:$0x1]
        %v351 = vld [vmem:[%s348 + $0x2] sm:$0x1]
        %v352 = vld [vmem:[%s348 + $0x3] sm:$0x1]
        %v353 = vld [vmem:[%s348 + $0x4] sm:$0x1]
        %v354 = vld [vmem:[%s348 + $0x5] sm:$0x1]
        %v355 = vld [vmem:[%s348 + $0x6] sm:$0x1]
        %v356 = vld [vmem:[%s348 + $0x7] sm:$0x1]
        %v357 = vld [vmem:[%s348 + $0x8] sm:$0x1]
        %v358 = vld [vmem:[%s348 + $0x9] sm:$0x1]
        %v359 = vld [vmem:[%s348 + $0xa] sm:$0x1]
        %v360 = vld [vmem:[%s348 + $0xb] sm:$0x1]
        %v361 = vld [vmem:[%s348 + $0xc] sm:$0x1]
        %v362 = vld [vmem:[%s348 + $0xd] sm:$0x1]
        %v363 = vld [vmem:[%s348 + $0xe] sm:$0x1]
        %v364 = vld [vmem:[%s348 + $0xf] sm:$0x1]
        %s365 = sadd.s32 1, %s347
        %s366 = scalar_lea.vmem [#allocation2], %s365
        %v367 = vld [vmem:[%s366] sm:$0x1]
        %v368 = vld [vmem:[%s366 + $0x1] sm:$0x1]
        %v369 = vld [vmem:[%s366 + $0x2] sm:$0x1]
        %v370 = vld [vmem:[%s366 + $0x3] sm:$0x1]
        %v371 = vld [vmem:[%s366 + $0x4] sm:$0x1]
        %v372 = vld [vmem:[%s366 + $0x5] sm:$0x1]
        %v373 = vld [vmem:[%s366 + $0x6] sm:$0x1]
        %v374 = vld [vmem:[%s366 + $0x7] sm:$0x1]
        %v375 = vld [vmem:[%s366 + $0x8] sm:$0x1]
        %v376 = vld [vmem:[%s366 + $0x9] sm:$0x1]
        %v377 = vld [vmem:[%s366 + $0xa] sm:$0x1]
        %v378 = vld [vmem:[%s366 + $0xb] sm:$0x1]
        %v379 = vld [vmem:[%s366 + $0xc] sm:$0x1]
        %v380 = vld [vmem:[%s366 + $0xd] sm:$0x1]
        %v381 = vld [vmem:[%s366 + $0xe] sm:$0x1]
        %v382 = vld [vmem:[%s366 + $0xf] sm:$0x1]
        %v383 = vmax.f32 %v349, %v367
        %v384 = vmax.f32 %v350, %v368
        %v385 = vmax.f32 %v351, %v369
        %v386 = vmax.f32 %v352, %v370
        %v387 = vmax.f32 %v353, %v371
        %v388 = vmax.f32 %v354, %v372
        %v389 = vmax.f32 %v355, %v373
        %v390 = vmax.f32 %v356, %v374
        %v391 = vmax.f32 %v357, %v375
        %v392 = vmax.f32 %v358, %v376
        %v393 = vmax.f32 %v359, %v377
        %v394 = vmax.f32 %v360, %v378
        %v395 = vmax.f32 %v361, %v379
        %v396 = vmax.f32 %v362, %v380
        %v397 = vmax.f32 %v363, %v381
        %v398 = vmax.f32 %v364, %v382
        %s399 = sadd.s32 2, %s347
        %s400 = scalar_lea.vmem [#allocation2], %s399
        %v401 = vld [vmem:[%s400] sm:$0x1]
        %v402 = vld [vmem:[%s400 + $0x1] sm:$0x1]
        %v403 = vld [vmem:[%s400 + $0x2] sm:$0x1]
        %v404 = vld [vmem:[%s400 + $0x3] sm:$0x1]
        %v405 = vld [vmem:[%s400 + $0x4] sm:$0x1]
        %v406 = vld [vmem:[%s400 + $0x5] sm:$0x1]
        %v407 = vld [vmem:[%s400 + $0x6] sm:$0x1]
        %v408 = vld [vmem:[%s400 + $0x7] sm:$0x1]
        %v409 = vld [vmem:[%s400 + $0x8] sm:$0x1]
        %v410 = vld [vmem:[%s400 + $0x9] sm:$0x1]
        %v411 = vld [vmem:[%s400 + $0xa] sm:$0x1]
        %v412 = vld [vmem:[%s400 + $0xb] sm:$0x1]
        %v413 = vld [vmem:[%s400 + $0xc] sm:$0x1]
        %v414 = vld [vmem:[%s400 + $0xd] sm:$0x1]
        %v415 = vld [vmem:[%s400 + $0xe] sm:$0x1]
        %v416 = vld [vmem:[%s400 + $0xf] sm:$0x1]
        %v417 = vmax.f32 %v383, %v401
        %v418 = vmax.f32 %v384, %v402
        %v419 = vmax.f32 %v385, %v403
        %v420 = vmax.f32 %v386, %v404
        %v421 = vmax.f32 %v387, %v405
        %v422 = vmax.f32 %v388, %v406
        %v423 = vmax.f32 %v389, %v407
        %v424 = vmax.f32 %v390, %v408
        %v425 = vmax.f32 %v391, %v409
        %v426 = vmax.f32 %v392, %v410
        %v427 = vmax.f32 %v393, %v411
        %v428 = vmax.f32 %v394, %v412
        %v429 = vmax.f32 %v395, %v413
        %v430 = vmax.f32 %v396, %v414
        %v431 = vmax.f32 %v397, %v415
        %v432 = vmax.f32 %v398, %v416
        %s433 = sadd.s32 3, %s347
        %s434 = scalar_lea.vmem [#allocation2], %s433
        %v435 = vld [vmem:[%s434] sm:$0x1]
        %v436 = vld [vmem:[%s434 + $0x1] sm:$0x1]
        %v437 = vld [vmem:[%s434 + $0x2] sm:$0x1]
        %v438 = vld [vmem:[%s434 + $0x3] sm:$0x1]
        %v439 = vld [vmem:[%s434 + $0x4] sm:$0x1]
        %v440 = vld [vmem:[%s434 + $0x5] sm:$0x1]
        %v441 = vld [vmem:[%s434 + $0x6] sm:$0x1]
        %v442 = vld [vmem:[%s434 + $0x7] sm:$0x1]
        %v443 = vld [vmem:[%s434 + $0x8] sm:$0x1]
        %v444 = vld [vmem:[%s434 + $0x9] sm:$0x1]
        %v445 = vld [vmem:[%s434 + $0xa] sm:$0x1]
        %v446 = vld [vmem:[%s434 + $0xb] sm:$0x1]
        %v447 = vld [vmem:[%s434 + $0xc] sm:$0x1]
        %v448 = vld [vmem:[%s434 + $0xd] sm:$0x1]
        %v449 = vld [vmem:[%s434 + $0xe] sm:$0x1]
        %v450 = vld [vmem:[%s434 + $0xf] sm:$0x1]
        %v451 = vmax.f32 %v417, %v435
        %v452 = vmax.f32 %v418, %v436
        %v453 = vmax.f32 %v419, %v437
        %v454 = vmax.f32 %v420, %v438
        %v455 = vmax.f32 %v421, %v439
        %v456 = vmax.f32 %v422, %v440
        %v457 = vmax.f32 %v423, %v441
        %v458 = vmax.f32 %v424, %v442
        %v459 = vmax.f32 %v425, %v443
        %v460 = vmax.f32 %v426, %v444
        %v461 = vmax.f32 %v427, %v445
        %v462 = vmax.f32 %v428, %v446
        %v463 = vmax.f32 %v429, %v447
        %v464 = vmax.f32 %v430, %v448
        %v465 = vmax.f32 %v431, %v449
        %v466 = vmax.f32 %v432, %v450
        %s467 = sadd.s32 4, %s347
        %s468 = scalar_lea.vmem [#allocation2], %s467
        %v469 = vld [vmem:[%s468] sm:$0x1]
        %v470 = vld [vmem:[%s468 + $0x1] sm:$0x1]
        %v471 = vld [vmem:[%s468 + $0x2] sm:$0x1]
        %v472 = vld [vmem:[%s468 + $0x3] sm:$0x1]
        %v473 = vld [vmem:[%s468 + $0x4] sm:$0x1]
        %v474 = vld [vmem:[%s468 + $0x5] sm:$0x1]
        %v475 = vld [vmem:[%s468 + $0x6] sm:$0x1]
        %v476 = vld [vmem:[%s468 + $0x7] sm:$0x1]
        %v477 = vld [vmem:[%s468 + $0x8] sm:$0x1]
        %v478 = vld [vmem:[%s468 + $0x9] sm:$0x1]
        %v479 = vld [vmem:[%s468 + $0xa] sm:$0x1]
        %v480 = vld [vmem:[%s468 + $0xb] sm:$0x1]
        %v481 = vld [vmem:[%s468 + $0xc] sm:$0x1]
        %v482 = vld [vmem:[%s468 + $0xd] sm:$0x1]
        %v483 = vld [vmem:[%s468 + $0xe] sm:$0x1]
        %v484 = vld [vmem:[%s468 + $0xf] sm:$0x1]
        %v485 = vmax.f32 %v451, %v469
        %v486 = vmax.f32 %v452, %v470
        %v487 = vmax.f32 %v453, %v471
        %v488 = vmax.f32 %v454, %v472
        %v489 = vmax.f32 %v455, %v473
        %v490 = vmax.f32 %v456, %v474
        %v491 = vmax.f32 %v457, %v475
        %v492 = vmax.f32 %v458, %v476
        %v493 = vmax.f32 %v459, %v477
        %v494 = vmax.f32 %v460, %v478
        %v495 = vmax.f32 %v461, %v479
        %v496 = vmax.f32 %v462, %v480
        %v497 = vmax.f32 %v463, %v481
        %v498 = vmax.f32 %v464, %v482
        %v499 = vmax.f32 %v465, %v483
        %v500 = vmax.f32 %v466, %v484
        %s501 = sadd.s32 %s342, 2
        %s502 = smul.u32 %s501, 16
        %s503 = scalar_lea.vmem [#allocation3], %s502
        %vm504 = vcmask 24576
        %505 = vst.msk [vmem:[%s503] sm:$0x1] %vm504, %v485
        %506 = vst.msk [vmem:[%s503 + $0x1] sm:$0x1] %vm504, %v486
        %507 = vst.msk [vmem:[%s503 + $0x2] sm:$0x1] %vm504, %v487
        %508 = vst.msk [vmem:[%s503 + $0x3] sm:$0x1] %vm504, %v488
        %509 = vst.msk [vmem:[%s503 + $0x4] sm:$0x1] %vm504, %v489
        %510 = vst.msk [vmem:[%s503 + $0x5] sm:$0x1] %vm504, %v490
        %511 = vst.msk [vmem:[%s503 + $0x6] sm:$0x1] %vm504, %v491
        %512 = vst.msk [vmem:[%s503 + $0x7] sm:$0x1] %vm504, %v492
        %513 = vst.msk [vmem:[%s503 + $0x8] sm:$0x1] %vm504, %v493
        %514 = vst.msk [vmem:[%s503 + $0x9] sm:$0x1] %vm504, %v494
        %515 = vst.msk [vmem:[%s503 + $0xa] sm:$0x1] %vm504, %v495
        %516 = vst.msk [vmem:[%s503 + $0xb] sm:$0x1] %vm504, %v496
        %517 = vst.msk [vmem:[%s503 + $0xc] sm:$0x1] %vm504, %v497
        %518 = vst.msk [vmem:[%s503 + $0xd] sm:$0x1] %vm504, %v498
        %519 = vst.msk [vmem:[%s503 + $0xe] sm:$0x1] %vm504, %v499
        %520 = vst.msk [vmem:[%s503 + $0xf] sm:$0x1] %vm504, %v500
      $region40: #{tpu_custom_call.1} parent=23 // loop_footer
        %s346 = sadd.s32 1, %s342
      $region41: #{tpu_custom_call.1} parent=23 // loop_footer_branch
        %341 = sbr.rel target = $region37
      $region42: #{tpu_custom_call.1} parent=23 // loop_exit
        _
      loop: start=0, step=1, limit=16
      $region43: #{tpu_custom_call.1} parent=23 // loop_pre_header
        _
      $region44: #{tpu_custom_call.1} parent=23 // loop_header
        %s522 = sphi 0, %s526
        %p523 = scmp.ge.s32.totalorder %s522, 16
      $region45: #{tpu_custom_call.1} parent=23 // loop_header_branch
        %525 = sbr.rel (%p523) target = $region49
      $region46: #{tpu_custom_call.1} parent=23 // loop_body
        %s527 = smul.u32 %s522, 16
        %s528 = scalar_lea.vmem [#allocation3], %s527
        %v529 = vld [vmem:[%s528] sm:$0x1]
        %v530 = vld [vmem:[%s528 + $0x1] sm:$0x1]
        %v531 = vld [vmem:[%s528 + $0x2] sm:$0x1]
        %v532 = vld [vmem:[%s528 + $0x3] sm:$0x1]
        %v533 = vld [vmem:[%s528 + $0x4] sm:$0x1]
        %v534 = vld [vmem:[%s528 + $0x5] sm:$0x1]
        %v535 = vld [vmem:[%s528 + $0x6] sm:$0x1]
        %v536 = vld [vmem:[%s528 + $0x7] sm:$0x1]
        %v537 = vld [vmem:[%s528 + $0x8] sm:$0x1]
        %v538 = vld [vmem:[%s528 + $0x9] sm:$0x1]
        %v539 = vld [vmem:[%s528 + $0xa] sm:$0x1]
        %v540 = vld [vmem:[%s528 + $0xb] sm:$0x1]
        %v541 = vld [vmem:[%s528 + $0xc] sm:$0x1]
        %v542 = vld [vmem:[%s528 + $0xd] sm:$0x1]
        %v543 = vld [vmem:[%s528 + $0xe] sm:$0x1]
        %v544 = vld [vmem:[%s528 + $0xf] sm:$0x1]
        %s545 = sadd.s32 %s522, 1
        %s546 = smul.u32 %s545, 16
        %s547 = scalar_lea.vmem [#allocation3], %s546
        %v548 = vld [vmem:[%s547] sm:$0x1]
        %v549 = vld [vmem:[%s547 + $0x1] sm:$0x1]
        %v550 = vld [vmem:[%s547 + $0x2] sm:$0x1]
        %v551 = vld [vmem:[%s547 + $0x3] sm:$0x1]
        %v552 = vld [vmem:[%s547 + $0x4] sm:$0x1]
        %v553 = vld [vmem:[%s547 + $0x5] sm:$0x1]
        %v554 = vld [vmem:[%s547 + $0x6] sm:$0x1]
        %v555 = vld [vmem:[%s547 + $0x7] sm:$0x1]
        %v556 = vld [vmem:[%s547 + $0x8] sm:$0x1]
        %v557 = vld [vmem:[%s547 + $0x9] sm:$0x1]
        %v558 = vld [vmem:[%s547 + $0xa] sm:$0x1]
        %v559 = vld [vmem:[%s547 + $0xb] sm:$0x1]
        %v560 = vld [vmem:[%s547 + $0xc] sm:$0x1]
        %v561 = vld [vmem:[%s547 + $0xd] sm:$0x1]
        %v562 = vld [vmem:[%s547 + $0xe] sm:$0x1]
        %v563 = vld [vmem:[%s547 + $0xf] sm:$0x1]
        %v564 = vmax.f32 %v529, %v548
        %v565 = vmax.f32 %v530, %v549
        %v566 = vmax.f32 %v531, %v550
        %v567 = vmax.f32 %v532, %v551
        %v568 = vmax.f32 %v533, %v552
        %v569 = vmax.f32 %v534, %v553
        %v570 = vmax.f32 %v535, %v554
        %v571 = vmax.f32 %v536, %v555
        %v572 = vmax.f32 %v537, %v556
        %v573 = vmax.f32 %v538, %v557
        %v574 = vmax.f32 %v539, %v558
        %v575 = vmax.f32 %v540, %v559
        %v576 = vmax.f32 %v541, %v560
        %v577 = vmax.f32 %v542, %v561
        %v578 = vmax.f32 %v543, %v562
        %v579 = vmax.f32 %v544, %v563
        %s580 = sadd.s32 %s522, 2
        %s581 = smul.u32 %s580, 16
        %s582 = scalar_lea.vmem [#allocation3], %s581
        %v583 = vld [vmem:[%s582] sm:$0x1]
        %v584 = vld [vmem:[%s582 + $0x1] sm:$0x1]
        %v585 = vld [vmem:[%s582 + $0x2] sm:$0x1]
        %v586 = vld [vmem:[%s582 + $0x3] sm:$0x1]
        %v587 = vld [vmem:[%s582 + $0x4] sm:$0x1]
        %v588 = vld [vmem:[%s582 + $0x5] sm:$0x1]
        %v589 = vld [vmem:[%s582 + $0x6] sm:$0x1]
        %v590 = vld [vmem:[%s582 + $0x7] sm:$0x1]
        %v591 = vld [vmem:[%s582 + $0x8] sm:$0x1]
        %v592 = vld [vmem:[%s582 + $0x9] sm:$0x1]
        %v593 = vld [vmem:[%s582 + $0xa] sm:$0x1]
        %v594 = vld [vmem:[%s582 + $0xb] sm:$0x1]
        %v595 = vld [vmem:[%s582 + $0xc] sm:$0x1]
        %v596 = vld [vmem:[%s582 + $0xd] sm:$0x1]
        %v597 = vld [vmem:[%s582 + $0xe] sm:$0x1]
        %v598 = vld [vmem:[%s582 + $0xf] sm:$0x1]
        %v599 = vmax.f32 %v564, %v583
        %v600 = vmax.f32 %v565, %v584
        %v601 = vmax.f32 %v566, %v585
        %v602 = vmax.f32 %v567, %v586
        %v603 = vmax.f32 %v568, %v587
        %v604 = vmax.f32 %v569, %v588
        %v605 = vmax.f32 %v570, %v589
        %v606 = vmax.f32 %v571, %v590
        %v607 = vmax.f32 %v572, %v591
        %v608 = vmax.f32 %v573, %v592
        %v609 = vmax.f32 %v574, %v593
        %v610 = vmax.f32 %v575, %v594
        %v611 = vmax.f32 %v576, %v595
        %v612 = vmax.f32 %v577, %v596
        %v613 = vmax.f32 %v578, %v597
        %v614 = vmax.f32 %v579, %v598
        %s615 = sadd.s32 %s522, 3
        %s616 = smul.u32 %s615, 16
        %s617 = scalar_lea.vmem [#allocation3], %s616
        %v618 = vld [vmem:[%s617] sm:$0x1]
        %v619 = vld [vmem:[%s617 + $0x1] sm:$0x1]
        %v620 = vld [vmem:[%s617 + $0x2] sm:$0x1]
        %v621 = vld [vmem:[%s617 + $0x3] sm:$0x1]
        %v622 = vld [vmem:[%s617 + $0x4] sm:$0x1]
        %v623 = vld [vmem:[%s617 + $0x5] sm:$0x1]
        %v624 = vld [vmem:[%s617 + $0x6] sm:$0x1]
        %v625 = vld [vmem:[%s617 + $0x7] sm:$0x1]
        %v626 = vld [vmem:[%s617 + $0x8] sm:$0x1]
        %v627 = vld [vmem:[%s617 + $0x9] sm:$0x1]
        %v628 = vld [vmem:[%s617 + $0xa] sm:$0x1]
        %v629 = vld [vmem:[%s617 + $0xb] sm:$0x1]
        %v630 = vld [vmem:[%s617 + $0xc] sm:$0x1]
        %v631 = vld [vmem:[%s617 + $0xd] sm:$0x1]
        %v632 = vld [vmem:[%s617 + $0xe] sm:$0x1]
        %v633 = vld [vmem:[%s617 + $0xf] sm:$0x1]
        %v634 = vmax.f32 %v599, %v618
        %v635 = vmax.f32 %v600, %v619
        %v636 = vmax.f32 %v601, %v620
        %v637 = vmax.f32 %v602, %v621
        %v638 = vmax.f32 %v603, %v622
        %v639 = vmax.f32 %v604, %v623
        %v640 = vmax.f32 %v605, %v624
        %v641 = vmax.f32 %v606, %v625
        %v642 = vmax.f32 %v607, %v626
        %v643 = vmax.f32 %v608, %v627
        %v644 = vmax.f32 %v609, %v628
        %v645 = vmax.f32 %v610, %v629
        %v646 = vmax.f32 %v611, %v630
        %v647 = vmax.f32 %v612, %v631
        %v648 = vmax.f32 %v613, %v632
        %v649 = vmax.f32 %v614, %v633
        %s650 = sadd.s32 %s522, 4
        %s651 = smul.u32 %s650, 16
        %s652 = scalar_lea.vmem [#allocation3], %s651
        %v653 = vld [vmem:[%s652] sm:$0x1]
        %v654 = vld [vmem:[%s652 + $0x1] sm:$0x1]
        %v655 = vld [vmem:[%s652 + $0x2] sm:$0x1]
        %v656 = vld [vmem:[%s652 + $0x3] sm:$0x1]
        %v657 = vld [vmem:[%s652 + $0x4] sm:$0x1]
        %v658 = vld [vmem:[%s652 + $0x5] sm:$0x1]
        %v659 = vld [vmem:[%s652 + $0x6] sm:$0x1]
        %v660 = vld [vmem:[%s652 + $0x7] sm:$0x1]
        %v661 = vld [vmem:[%s652 + $0x8] sm:$0x1]
        %v662 = vld [vmem:[%s652 + $0x9] sm:$0x1]
        %v663 = vld [vmem:[%s652 + $0xa] sm:$0x1]
        %v664 = vld [vmem:[%s652 + $0xb] sm:$0x1]
        %v665 = vld [vmem:[%s652 + $0xc] sm:$0x1]
        %v666 = vld [vmem:[%s652 + $0xd] sm:$0x1]
        %v667 = vld [vmem:[%s652 + $0xe] sm:$0x1]
        %v668 = vld [vmem:[%s652 + $0xf] sm:$0x1]
        %v669 = vmax.f32 %v634, %v653
        %v670 = vmax.f32 %v635, %v654
        %v671 = vmax.f32 %v636, %v655
        %v672 = vmax.f32 %v637, %v656
        %v673 = vmax.f32 %v638, %v657
        %v674 = vmax.f32 %v639, %v658
        %v675 = vmax.f32 %v640, %v659
        %v676 = vmax.f32 %v641, %v660
        %v677 = vmax.f32 %v642, %v661
        %v678 = vmax.f32 %v643, %v662
        %v679 = vmax.f32 %v644, %v663
        %v680 = vmax.f32 %v645, %v664
        %v681 = vmax.f32 %v646, %v665
        %v682 = vmax.f32 %v647, %v666
        %v683 = vmax.f32 %v648, %v667
        %v684 = vmax.f32 %v649, %v668
        %s685 = smul.u32 %s522, 64
        %s686 = scalar_lea.vmem %s142, %s685
        %vm687 = vcmask 24576
        %688 = vst.msk [vmem:[%s686] sm:$0x1] %vm687, %v669
        %689 = vst.msk [vmem:[%s686 + $0x4] sm:$0x1] %vm687, %v670
        %690 = vst.msk [vmem:[%s686 + $0x8] sm:$0x1] %vm687, %v671
        %691 = vst.msk [vmem:[%s686 + $0xc] sm:$0x1] %vm687, %v672
        %692 = vst.msk [vmem:[%s686 + $0x10] sm:$0x1] %vm687, %v673
        %693 = vst.msk [vmem:[%s686 + $0x14] sm:$0x1] %vm687, %v674
        %694 = vst.msk [vmem:[%s686 + $0x18] sm:$0x1] %vm687, %v675
        %695 = vst.msk [vmem:[%s686 + $0x1c] sm:$0x1] %vm687, %v676
        %696 = vst.msk [vmem:[%s686 + $0x20] sm:$0x1] %vm687, %v677
        %697 = vst.msk [vmem:[%s686 + $0x24] sm:$0x1] %vm687, %v678
        %698 = vst.msk [vmem:[%s686 + $0x28] sm:$0x1] %vm687, %v679
        %699 = vst.msk [vmem:[%s686 + $0x2c] sm:$0x1] %vm687, %v680
        %700 = vst.msk [vmem:[%s686 + $0x30] sm:$0x1] %vm687, %v681
        %701 = vst.msk [vmem:[%s686 + $0x34] sm:$0x1] %vm687, %v682
        %702 = vst.msk [vmem:[%s686 + $0x38] sm:$0x1] %vm687, %v683
        %703 = vst.msk [vmem:[%s686 + $0x3c] sm:$0x1] %vm687, %v684
        %s704 = smul.u32 %s522, 20
        %s705 = sadd.s32 2, %s704
        %s706 = scalar_lea.vmem [#allocation2], %s705
        %707 = vst.msk [vmem:[%s706] sm:$0x1] %vm687, %v669
        %708 = vst.msk [vmem:[%s706 + $0x1] sm:$0x1] %vm687, %v670
        %709 = vst.msk [vmem:[%s706 + $0x2] sm:$0x1] %vm687, %v671
        %710 = vst.msk [vmem:[%s706 + $0x3] sm:$0x1] %vm687, %v672
        %711 = vst.msk [vmem:[%s706 + $0x4] sm:$0x1] %vm687, %v673
        %712 = vst.msk [vmem:[%s706 + $0x5] sm:$0x1] %vm687, %v674
        %713 = vst.msk [vmem:[%s706 + $0x6] sm:$0x1] %vm687, %v675
        %714 = vst.msk [vmem:[%s706 + $0x7] sm:$0x1] %vm687, %v676
        %715 = vst.msk [vmem:[%s706 + $0x8] sm:$0x1] %vm687, %v677
        %716 = vst.msk [vmem:[%s706 + $0x9] sm:$0x1] %vm687, %v678
        %717 = vst.msk [vmem:[%s706 + $0xa] sm:$0x1] %vm687, %v679
        %718 = vst.msk [vmem:[%s706 + $0xb] sm:$0x1] %vm687, %v680
        %719 = vst.msk [vmem:[%s706 + $0xc] sm:$0x1] %vm687, %v681
        %720 = vst.msk [vmem:[%s706 + $0xd] sm:$0x1] %vm687, %v682
        %721 = vst.msk [vmem:[%s706 + $0xe] sm:$0x1] %vm687, %v683
        %722 = vst.msk [vmem:[%s706 + $0xf] sm:$0x1] %vm687, %v684
      $region47: #{tpu_custom_call.1} parent=23 // loop_footer
        %s526 = sadd.s32 1, %s522
      $region48: #{tpu_custom_call.1} parent=23 // loop_footer_branch
        %521 = sbr.rel target = $region44
      $region49: #{tpu_custom_call.1} parent=23 // loop_exit
        _
      loop: start=0, step=1, limit=16
      $region50: #{tpu_custom_call.1} parent=23 // loop_pre_header
        _
      $region51: #{tpu_custom_call.1} parent=23 // loop_header
        %s724 = sphi 0, %s728
        %p725 = scmp.ge.s32.totalorder %s724, 16
      $region52: #{tpu_custom_call.1} parent=23 // loop_header_branch
        %727 = sbr.rel (%p725) target = $region56
      $region53: #{tpu_custom_call.1} parent=23 // loop_body
        %s729 = smul.u32 %s724, 20
        %s730 = scalar_lea.vmem [#allocation2], %s729
        %v731 = vld [vmem:[%s730] sm:$0x1]
        %v732 = vld [vmem:[%s730 + $0x1] sm:$0x1]
        %v733 = vld [vmem:[%s730 + $0x2] sm:$0x1]
        %v734 = vld [vmem:[%s730 + $0x3] sm:$0x1]
        %v735 = vld [vmem:[%s730 + $0x4] sm:$0x1]
        %v736 = vld [vmem:[%s730 + $0x5] sm:$0x1]
        %v737 = vld [vmem:[%s730 + $0x6] sm:$0x1]
        %v738 = vld [vmem:[%s730 + $0x7] sm:$0x1]
        %v739 = vld [vmem:[%s730 + $0x8] sm:$0x1]
        %v740 = vld [vmem:[%s730 + $0x9] sm:$0x1]
        %v741 = vld [vmem:[%s730 + $0xa] sm:$0x1]
        %v742 = vld [vmem:[%s730 + $0xb] sm:$0x1]
        %v743 = vld [vmem:[%s730 + $0xc] sm:$0x1]
        %v744 = vld [vmem:[%s730 + $0xd] sm:$0x1]
        %v745 = vld [vmem:[%s730 + $0xe] sm:$0x1]
        %v746 = vld [vmem:[%s730 + $0xf] sm:$0x1]
        %s747 = sadd.s32 1, %s729
        %s748 = scalar_lea.vmem [#allocation2], %s747
        %v749 = vld [vmem:[%s748] sm:$0x1]
        %v750 = vld [vmem:[%s748 + $0x1] sm:$0x1]
        %v751 = vld [vmem:[%s748 + $0x2] sm:$0x1]
        %v752 = vld [vmem:[%s748 + $0x3] sm:$0x1]
        %v753 = vld [vmem:[%s748 + $0x4] sm:$0x1]
        %v754 = vld [vmem:[%s748 + $0x5] sm:$0x1]
        %v755 = vld [vmem:[%s748 + $0x6] sm:$0x1]
        %v756 = vld [vmem:[%s748 + $0x7] sm:$0x1]
        %v757 = vld [vmem:[%s748 + $0x8] sm:$0x1]
        %v758 = vld [vmem:[%s748 + $0x9] sm:$0x1]
        %v759 = vld [vmem:[%s748 + $0xa] sm:$0x1]
        %v760 = vld [vmem:[%s748 + $0xb] sm:$0x1]
        %v761 = vld [vmem:[%s748 + $0xc] sm:$0x1]
        %v762 = vld [vmem:[%s748 + $0xd] sm:$0x1]
        %v763 = vld [vmem:[%s748 + $0xe] sm:$0x1]
        %v764 = vld [vmem:[%s748 + $0xf] sm:$0x1]
        %v765 = vmax.f32 %v731, %v749
        %v766 = vmax.f32 %v732, %v750
        %v767 = vmax.f32 %v733, %v751
        %v768 = vmax.f32 %v734, %v752
        %v769 = vmax.f32 %v735, %v753
        %v770 = vmax.f32 %v736, %v754
        %v771 = vmax.f32 %v737, %v755
        %v772 = vmax.f32 %v738, %v756
        %v773 = vmax.f32 %v739, %v757
        %v774 = vmax.f32 %v740, %v758
        %v775 = vmax.f32 %v741, %v759
        %v776 = vmax.f32 %v742, %v760
        %v777 = vmax.f32 %v743, %v761
        %v778 = vmax.f32 %v744, %v762
        %v779 = vmax.f32 %v745, %v763
        %v780 = vmax.f32 %v746, %v764
        %s781 = sadd.s32 2, %s729
        %s782 = scalar_lea.vmem [#allocation2], %s781
        %v783 = vld [vmem:[%s782] sm:$0x1]
        %v784 = vld [vmem:[%s782 + $0x1] sm:$0x1]
        %v785 = vld [vmem:[%s782 + $0x2] sm:$0x1]
        %v786 = vld [vmem:[%s782 + $0x3] sm:$0x1]
        %v787 = vld [vmem:[%s782 + $0x4] sm:$0x1]
        %v788 = vld [vmem:[%s782 + $0x5] sm:$0x1]
        %v789 = vld [vmem:[%s782 + $0x6] sm:$0x1]
        %v790 = vld [vmem:[%s782 + $0x7] sm:$0x1]
        %v791 = vld [vmem:[%s782 + $0x8] sm:$0x1]
        %v792 = vld [vmem:[%s782 + $0x9] sm:$0x1]
        %v793 = vld [vmem:[%s782 + $0xa] sm:$0x1]
        %v794 = vld [vmem:[%s782 + $0xb] sm:$0x1]
        %v795 = vld [vmem:[%s782 + $0xc] sm:$0x1]
        %v796 = vld [vmem:[%s782 + $0xd] sm:$0x1]
        %v797 = vld [vmem:[%s782 + $0xe] sm:$0x1]
        %v798 = vld [vmem:[%s782 + $0xf] sm:$0x1]
        %v799 = vmax.f32 %v765, %v783
        %v800 = vmax.f32 %v766, %v784
        %v801 = vmax.f32 %v767, %v785
        %v802 = vmax.f32 %v768, %v786
        %v803 = vmax.f32 %v769, %v787
        %v804 = vmax.f32 %v770, %v788
        %v805 = vmax.f32 %v771, %v789
        %v806 = vmax.f32 %v772, %v790
        %v807 = vmax.f32 %v773, %v791
        %v808 = vmax.f32 %v774, %v792
        %v809 = vmax.f32 %v775, %v793
        %v810 = vmax.f32 %v776, %v794
        %v811 = vmax.f32 %v777, %v795
        %v812 = vmax.f32 %v778, %v796
        %v813 = vmax.f32 %v779, %v797
        %v814 = vmax.f32 %v780, %v798
        %s815 = sadd.s32 3, %s729
        %s816 = scalar_lea.vmem [#allocation2], %s815
        %v817 = vld [vmem:[%s816] sm:$0x1]
        %v818 = vld [vmem:[%s816 + $0x1] sm:$0x1]
        %v819 = vld [vmem:[%s816 + $0x2] sm:$0x1]
        %v820 = vld [vmem:[%s816 + $0x3] sm:$0x1]
        %v821 = vld [vmem:[%s816 + $0x4] sm:$0x1]
        %v822 = vld [vmem:[%s816 + $0x5] sm:$0x1]
        %v823 = vld [vmem:[%s816 + $0x6] sm:$0x1]
        %v824 = vld [vmem:[%s816 + $0x7] sm:$0x1]
        %v825 = vld [vmem:[%s816 + $0x8] sm:$0x1]
        %v826 = vld [vmem:[%s816 + $0x9] sm:$0x1]
        %v827 = vld [vmem:[%s816 + $0xa] sm:$0x1]
        %v828 = vld [vmem:[%s816 + $0xb] sm:$0x1]
        %v829 = vld [vmem:[%s816 + $0xc] sm:$0x1]
        %v830 = vld [vmem:[%s816 + $0xd] sm:$0x1]
        %v831 = vld [vmem:[%s816 + $0xe] sm:$0x1]
        %v832 = vld [vmem:[%s816 + $0xf] sm:$0x1]
        %v833 = vmax.f32 %v799, %v817
        %v834 = vmax.f32 %v800, %v818
        %v835 = vmax.f32 %v801, %v819
        %v836 = vmax.f32 %v802, %v820
        %v837 = vmax.f32 %v803, %v821
        %v838 = vmax.f32 %v804, %v822
        %v839 = vmax.f32 %v805, %v823
        %v840 = vmax.f32 %v806, %v824
        %v841 = vmax.f32 %v807, %v825
        %v842 = vmax.f32 %v808, %v826
        %v843 = vmax.f32 %v809, %v827
        %v844 = vmax.f32 %v810, %v828
        %v845 = vmax.f32 %v811, %v829
        %v846 = vmax.f32 %v812, %v830
        %v847 = vmax.f32 %v813, %v831
        %v848 = vmax.f32 %v814, %v832
        %s849 = sadd.s32 4, %s729
        %s850 = scalar_lea.vmem [#allocation2], %s849
        %v851 = vld [vmem:[%s850] sm:$0x1]
        %v852 = vld [vmem:[%s850 + $0x1] sm:$0x1]
        %v853 = vld [vmem:[%s850 + $0x2] sm:$0x1]
        %v854 = vld [vmem:[%s850 + $0x3] sm:$0x1]
        %v855 = vld [vmem:[%s850 + $0x4] sm:$0x1]
        %v856 = vld [vmem:[%s850 + $0x5] sm:$0x1]
        %v857 = vld [vmem:[%s850 + $0x6] sm:$0x1]
        %v858 = vld [vmem:[%s850 + $0x7] sm:$0x1]
        %v859 = vld [vmem:[%s850 + $0x8] sm:$0x1]
        %v860 = vld [vmem:[%s850 + $0x9] sm:$0x1]
        %v861 = vld [vmem:[%s850 + $0xa] sm:$0x1]
        %v862 = vld [vmem:[%s850 + $0xb] sm:$0x1]
        %v863 = vld [vmem:[%s850 + $0xc] sm:$0x1]
        %v864 = vld [vmem:[%s850 + $0xd] sm:$0x1]
        %v865 = vld [vmem:[%s850 + $0xe] sm:$0x1]
        %v866 = vld [vmem:[%s850 + $0xf] sm:$0x1]
        %v867 = vmax.f32 %v833, %v851
        %v868 = vmax.f32 %v834, %v852
        %v869 = vmax.f32 %v835, %v853
        %v870 = vmax.f32 %v836, %v854
        %v871 = vmax.f32 %v837, %v855
        %v872 = vmax.f32 %v838, %v856
        %v873 = vmax.f32 %v839, %v857
        %v874 = vmax.f32 %v840, %v858
        %v875 = vmax.f32 %v841, %v859
        %v876 = vmax.f32 %v842, %v860
        %v877 = vmax.f32 %v843, %v861
        %v878 = vmax.f32 %v844, %v862
        %v879 = vmax.f32 %v845, %v863
        %v880 = vmax.f32 %v846, %v864
        %v881 = vmax.f32 %v847, %v865
        %v882 = vmax.f32 %v848, %v866
        %s883 = sadd.s32 %s724, 2
        %s884 = smul.u32 %s883, 16
        %s885 = scalar_lea.vmem [#allocation3], %s884
        %vm886 = vcmask 24576
        %887 = vst.msk [vmem:[%s885] sm:$0x1] %vm886, %v867
        %888 = vst.msk [vmem:[%s885 + $0x1] sm:$0x1] %vm886, %v868
        %889 = vst.msk [vmem:[%s885 + $0x2] sm:$0x1] %vm886, %v869
        %890 = vst.msk [vmem:[%s885 + $0x3] sm:$0x1] %vm886, %v870
        %891 = vst.msk [vmem:[%s885 + $0x4] sm:$0x1] %vm886, %v871
        %892 = vst.msk [vmem:[%s885 + $0x5] sm:$0x1] %vm886, %v872
        %893 = vst.msk [vmem:[%s885 + $0x6] sm:$0x1] %vm886, %v873
        %894 = vst.msk [vmem:[%s885 + $0x7] sm:$0x1] %vm886, %v874
        %895 = vst.msk [vmem:[%s885 + $0x8] sm:$0x1] %vm886, %v875
        %896 = vst.msk [vmem:[%s885 + $0x9] sm:$0x1] %vm886, %v876
        %897 = vst.msk [vmem:[%s885 + $0xa] sm:$0x1] %vm886, %v877
        %898 = vst.msk [vmem:[%s885 + $0xb] sm:$0x1] %vm886, %v878
        %899 = vst.msk [vmem:[%s885 + $0xc] sm:$0x1] %vm886, %v879
        %900 = vst.msk [vmem:[%s885 + $0xd] sm:$0x1] %vm886, %v880
        %901 = vst.msk [vmem:[%s885 + $0xe] sm:$0x1] %vm886, %v881
        %902 = vst.msk [vmem:[%s885 + $0xf] sm:$0x1] %vm886, %v882
      $region54: #{tpu_custom_call.1} parent=23 // loop_footer
        %s728 = sadd.s32 1, %s724
      $region55: #{tpu_custom_call.1} parent=23 // loop_footer_branch
        %723 = sbr.rel target = $region51
      $region56: #{tpu_custom_call.1} parent=23 // loop_exit
        _
      loop: start=0, step=1, limit=16
      $region57: #{tpu_custom_call.1} parent=23 // loop_pre_header
        _
      $region58: #{tpu_custom_call.1} parent=23 // loop_header
        %s904 = sphi 0, %s908
        %p905 = scmp.ge.s32.totalorder %s904, 16
      $region59: #{tpu_custom_call.1} parent=23 // loop_header_branch
        %907 = sbr.rel (%p905) target = $region63
      $region60: #{tpu_custom_call.1} parent=23 // loop_body
        %s909 = smul.u32 %s904, 16
        %s910 = scalar_lea.vmem [#allocation3], %s909
        %v911 = vld [vmem:[%s910] sm:$0x1]
        %v912 = vld [vmem:[%s910 + $0x1] sm:$0x1]
        %v913 = vld [vmem:[%s910 + $0x2] sm:$0x1]
        %v914 = vld [vmem:[%s910 + $0x3] sm:$0x1]
        %v915 = vld [vmem:[%s910 + $0x4] sm:$0x1]
        %v916 = vld [vmem:[%s910 + $0x5] sm:$0x1]
        %v917 = vld [vmem:[%s910 + $0x6] sm:$0x1]
        %v918 = vld [vmem:[%s910 + $0x7] sm:$0x1]
        %v919 = vld [vmem:[%s910 + $0x8] sm:$0x1]
        %v920 = vld [vmem:[%s910 + $0x9] sm:$0x1]
        %v921 = vld [vmem:[%s910 + $0xa] sm:$0x1]
        %v922 = vld [vmem:[%s910 + $0xb] sm:$0x1]
        %v923 = vld [vmem:[%s910 + $0xc] sm:$0x1]
        %v924 = vld [vmem:[%s910 + $0xd] sm:$0x1]
        %v925 = vld [vmem:[%s910 + $0xe] sm:$0x1]
        %v926 = vld [vmem:[%s910 + $0xf] sm:$0x1]
        %s927 = sadd.s32 %s904, 1
        %s928 = smul.u32 %s927, 16
        %s929 = scalar_lea.vmem [#allocation3], %s928
        %v930 = vld [vmem:[%s929] sm:$0x1]
        %v931 = vld [vmem:[%s929 + $0x1] sm:$0x1]
        %v932 = vld [vmem:[%s929 + $0x2] sm:$0x1]
        %v933 = vld [vmem:[%s929 + $0x3] sm:$0x1]
        %v934 = vld [vmem:[%s929 + $0x4] sm:$0x1]
        %v935 = vld [vmem:[%s929 + $0x5] sm:$0x1]
        %v936 = vld [vmem:[%s929 + $0x6] sm:$0x1]
        %v937 = vld [vmem:[%s929 + $0x7] sm:$0x1]
        %v938 = vld [vmem:[%s929 + $0x8] sm:$0x1]
        %v939 = vld [vmem:[%s929 + $0x9] sm:$0x1]
        %v940 = vld [vmem:[%s929 + $0xa] sm:$0x1]
        %v941 = vld [vmem:[%s929 + $0xb] sm:$0x1]
        %v942 = vld [vmem:[%s929 + $0xc] sm:$0x1]
        %v943 = vld [vmem:[%s929 + $0xd] sm:$0x1]
        %v944 = vld [vmem:[%s929 + $0xe] sm:$0x1]
        %v945 = vld [vmem:[%s929 + $0xf] sm:$0x1]
        %v946 = vmax.f32 %v911, %v930
        %v947 = vmax.f32 %v912, %v931
        %v948 = vmax.f32 %v913, %v932
        %v949 = vmax.f32 %v914, %v933
        %v950 = vmax.f32 %v915, %v934
        %v951 = vmax.f32 %v916, %v935
        %v952 = vmax.f32 %v917, %v936
        %v953 = vmax.f32 %v918, %v937
        %v954 = vmax.f32 %v919, %v938
        %v955 = vmax.f32 %v920, %v939
        %v956 = vmax.f32 %v921, %v940
        %v957 = vmax.f32 %v922, %v941
        %v958 = vmax.f32 %v923, %v942
        %v959 = vmax.f32 %v924, %v943
        %v960 = vmax.f32 %v925, %v944
        %v961 = vmax.f32 %v926, %v945
        %s962 = sadd.s32 %s904, 2
        %s963 = smul.u32 %s962, 16
        %s964 = scalar_lea.vmem [#allocation3], %s963
        %v965 = vld [vmem:[%s964] sm:$0x1]
        %v966 = vld [vmem:[%s964 + $0x1] sm:$0x1]
        %v967 = vld [vmem:[%s964 + $0x2] sm:$0x1]
        %v968 = vld [vmem:[%s964 + $0x3] sm:$0x1]
        %v969 = vld [vmem:[%s964 + $0x4] sm:$0x1]
        %v970 = vld [vmem:[%s964 + $0x5] sm:$0x1]
        %v971 = vld [vmem:[%s964 + $0x6] sm:$0x1]
        %v972 = vld [vmem:[%s964 + $0x7] sm:$0x1]
        %v973 = vld [vmem:[%s964 + $0x8] sm:$0x1]
        %v974 = vld [vmem:[%s964 + $0x9] sm:$0x1]
        %v975 = vld [vmem:[%s964 + $0xa] sm:$0x1]
        %v976 = vld [vmem:[%s964 + $0xb] sm:$0x1]
        %v977 = vld [vmem:[%s964 + $0xc] sm:$0x1]
        %v978 = vld [vmem:[%s964 + $0xd] sm:$0x1]
        %v979 = vld [vmem:[%s964 + $0xe] sm:$0x1]
        %v980 = vld [vmem:[%s964 + $0xf] sm:$0x1]
        %v981 = vmax.f32 %v946, %v965
        %v982 = vmax.f32 %v947, %v966
        %v983 = vmax.f32 %v948, %v967
        %v984 = vmax.f32 %v949, %v968
        %v985 = vmax.f32 %v950, %v969
        %v986 = vmax.f32 %v951, %v970
        %v987 = vmax.f32 %v952, %v971
        %v988 = vmax.f32 %v953, %v972
        %v989 = vmax.f32 %v954, %v973
        %v990 = vmax.f32 %v955, %v974
        %v991 = vmax.f32 %v956, %v975
        %v992 = vmax.f32 %v957, %v976
        %v993 = vmax.f32 %v958, %v977
        %v994 = vmax.f32 %v959, %v978
        %v995 = vmax.f32 %v960, %v979
        %v996 = vmax.f32 %v961, %v980
        %s997 = sadd.s32 %s904, 3
        %s998 = smul.u32 %s997, 16
        %s999 = scalar_lea.vmem [#allocation3], %s998
        %v1000 = vld [vmem:[%s999] sm:$0x1]
        %v1001 = vld [vmem:[%s999 + $0x1] sm:$0x1]
        %v1002 = vld [vmem:[%s999 + $0x2] sm:$0x1]
        %v1003 = vld [vmem:[%s999 + $0x3] sm:$0x1]
        %v1004 = vld [vmem:[%s999 + $0x4] sm:$0x1]
        %v1005 = vld [vmem:[%s999 + $0x5] sm:$0x1]
        %v1006 = vld [vmem:[%s999 + $0x6] sm:$0x1]
        %v1007 = vld [vmem:[%s999 + $0x7] sm:$0x1]
        %v1008 = vld [vmem:[%s999 + $0x8] sm:$0x1]
        %v1009 = vld [vmem:[%s999 + $0x9] sm:$0x1]
        %v1010 = vld [vmem:[%s999 + $0xa] sm:$0x1]
        %v1011 = vld [vmem:[%s999 + $0xb] sm:$0x1]
        %v1012 = vld [vmem:[%s999 + $0xc] sm:$0x1]
        %v1013 = vld [vmem:[%s999 + $0xd] sm:$0x1]
        %v1014 = vld [vmem:[%s999 + $0xe] sm:$0x1]
        %v1015 = vld [vmem:[%s999 + $0xf] sm:$0x1]
        %v1016 = vmax.f32 %v981, %v1000
        %v1017 = vmax.f32 %v982, %v1001
        %v1018 = vmax.f32 %v983, %v1002
        %v1019 = vmax.f32 %v984, %v1003
        %v1020 = vmax.f32 %v985, %v1004
        %v1021 = vmax.f32 %v986, %v1005
        %v1022 = vmax.f32 %v987, %v1006
        %v1023 = vmax.f32 %v988, %v1007
        %v1024 = vmax.f32 %v989, %v1008
        %v1025 = vmax.f32 %v990, %v1009
        %v1026 = vmax.f32 %v991, %v1010
        %v1027 = vmax.f32 %v992, %v1011
        %v1028 = vmax.f32 %v993, %v1012
        %v1029 = vmax.f32 %v994, %v1013
        %v1030 = vmax.f32 %v995, %v1014
        %v1031 = vmax.f32 %v996, %v1015
        %s1032 = sadd.s32 %s904, 4
        %s1033 = smul.u32 %s1032, 16
        %s1034 = scalar_lea.vmem [#allocation3], %s1033
        %v1035 = vld [vmem:[%s1034] sm:$0x1]
        %v1036 = vld [vmem:[%s1034 + $0x1] sm:$0x1]
        %v1037 = vld [vmem:[%s1034 + $0x2] sm:$0x1]
        %v1038 = vld [vmem:[%s1034 + $0x3] sm:$0x1]
        %v1039 = vld [vmem:[%s1034 + $0x4] sm:$0x1]
        %v1040 = vld [vmem:[%s1034 + $0x5] sm:$0x1]
        %v1041 = vld [vmem:[%s1034 + $0x6] sm:$0x1]
        %v1042 = vld [vmem:[%s1034 + $0x7] sm:$0x1]
        %v1043 = vld [vmem:[%s1034 + $0x8] sm:$0x1]
        %v1044 = vld [vmem:[%s1034 + $0x9] sm:$0x1]
        %v1045 = vld [vmem:[%s1034 + $0xa] sm:$0x1]
        %v1046 = vld [vmem:[%s1034 + $0xb] sm:$0x1]
        %v1047 = vld [vmem:[%s1034 + $0xc] sm:$0x1]
        %v1048 = vld [vmem:[%s1034 + $0xd] sm:$0x1]
        %v1049 = vld [vmem:[%s1034 + $0xe] sm:$0x1]
        %v1050 = vld [vmem:[%s1034 + $0xf] sm:$0x1]
        %v1051 = vmax.f32 %v1016, %v1035
        %v1052 = vmax.f32 %v1017, %v1036
        %v1053 = vmax.f32 %v1018, %v1037
        %v1054 = vmax.f32 %v1019, %v1038
        %v1055 = vmax.f32 %v1020, %v1039
        %v1056 = vmax.f32 %v1021, %v1040
        %v1057 = vmax.f32 %v1022, %v1041
        %v1058 = vmax.f32 %v1023, %v1042
        %v1059 = vmax.f32 %v1024, %v1043
        %v1060 = vmax.f32 %v1025, %v1044
        %v1061 = vmax.f32 %v1026, %v1045
        %v1062 = vmax.f32 %v1027, %v1046
        %v1063 = vmax.f32 %v1028, %v1047
        %v1064 = vmax.f32 %v1029, %v1048
        %v1065 = vmax.f32 %v1030, %v1049
        %v1066 = vmax.f32 %v1031, %v1050
        %s1067 = smul.u32 %s904, 64
        %s1068 = sadd.s32 1, %s1067
        %s1069 = scalar_lea.vmem %s142, %s1068
        %vm1070 = vcmask 24576
        %1071 = vst.msk [vmem:[%s1069] sm:$0x1] %vm1070, %v1051
        %1072 = vst.msk [vmem:[%s1069 + $0x4] sm:$0x1] %vm1070, %v1052
        %1073 = vst.msk [vmem:[%s1069 + $0x8] sm:$0x1] %vm1070, %v1053
        %1074 = vst.msk [vmem:[%s1069 + $0xc] sm:$0x1] %vm1070, %v1054
        %1075 = vst.msk [vmem:[%s1069 + $0x10] sm:$0x1] %vm1070, %v1055
        %1076 = vst.msk [vmem:[%s1069 + $0x14] sm:$0x1] %vm1070, %v1056
        %1077 = vst.msk [vmem:[%s1069 + $0x18] sm:$0x1] %vm1070, %v1057
        %1078 = vst.msk [vmem:[%s1069 + $0x1c] sm:$0x1] %vm1070, %v1058
        %1079 = vst.msk [vmem:[%s1069 + $0x20] sm:$0x1] %vm1070, %v1059
        %1080 = vst.msk [vmem:[%s1069 + $0x24] sm:$0x1] %vm1070, %v1060
        %1081 = vst.msk [vmem:[%s1069 + $0x28] sm:$0x1] %vm1070, %v1061
        %1082 = vst.msk [vmem:[%s1069 + $0x2c] sm:$0x1] %vm1070, %v1062
        %1083 = vst.msk [vmem:[%s1069 + $0x30] sm:$0x1] %vm1070, %v1063
        %1084 = vst.msk [vmem:[%s1069 + $0x34] sm:$0x1] %vm1070, %v1064
        %1085 = vst.msk [vmem:[%s1069 + $0x38] sm:$0x1] %vm1070, %v1065
        %1086 = vst.msk [vmem:[%s1069 + $0x3c] sm:$0x1] %vm1070, %v1066
        %s1087 = smul.u32 %s904, 20
        %s1088 = sadd.s32 2, %s1087
        %s1089 = scalar_lea.vmem [#allocation2], %s1088
        %1090 = vst.msk [vmem:[%s1089] sm:$0x1] %vm1070, %v1051
        %1091 = vst.msk [vmem:[%s1089 + $0x1] sm:$0x1] %vm1070, %v1052
        %1092 = vst.msk [vmem:[%s1089 + $0x2] sm:$0x1] %vm1070, %v1053
        %1093 = vst.msk [vmem:[%s1089 + $0x3] sm:$0x1] %vm1070, %v1054
        %1094 = vst.msk [vmem:[%s1089 + $0x4] sm:$0x1] %vm1070, %v1055
        %1095 = vst.msk [vmem:[%s1089 + $0x5] sm:$0x1] %vm1070, %v1056
        %1096 = vst.msk [vmem:[%s1089 + $0x6] sm:$0x1] %vm1070, %v1057
        %1097 = vst.msk [vmem:[%s1089 + $0x7] sm:$0x1] %vm1070, %v1058
        %1098 = vst.msk [vmem:[%s1089 + $0x8] sm:$0x1] %vm1070, %v1059
        %1099 = vst.msk [vmem:[%s1089 + $0x9] sm:$0x1] %vm1070, %v1060
        %1100 = vst.msk [vmem:[%s1089 + $0xa] sm:$0x1] %vm1070, %v1061
        %1101 = vst.msk [vmem:[%s1089 + $0xb] sm:$0x1] %vm1070, %v1062
        %1102 = vst.msk [vmem:[%s1089 + $0xc] sm:$0x1] %vm1070, %v1063
        %1103 = vst.msk [vmem:[%s1089 + $0xd] sm:$0x1] %vm1070, %v1064
        %1104 = vst.msk [vmem:[%s1089 + $0xe] sm:$0x1] %vm1070, %v1065
        %1105 = vst.msk [vmem:[%s1089 + $0xf] sm:$0x1] %vm1070, %v1066
      $region61: #{tpu_custom_call.1} parent=23 // loop_footer
        %s908 = sadd.s32 1, %s904
      $region62: #{tpu_custom_call.1} parent=23 // loop_footer_branch
        %903 = sbr.rel target = $region58
      $region63: #{tpu_custom_call.1} parent=23 // loop_exit
        _
      loop: start=0, step=1, limit=16
      $region64: #{tpu_custom_call.1} parent=23 // loop_pre_header
        _
      $region65: #{tpu_custom_call.1} parent=23 // loop_header
        %s1107 = sphi 0, %s1111
        %p1108 = scmp.ge.s32.totalorder %s1107, 16
      $region66: #{tpu_custom_call.1} parent=23 // loop_header_branch
        %1110 = sbr.rel (%p1108) target = $region70
      $region67: #{tpu_custom_call.1} parent=23 // loop_body
        %s1112 = smul.u32 %s1107, 20
        %s1113 = scalar_lea.vmem [#allocation2], %s1112
        %v1114 = vld [vmem:[%s1113] sm:$0x1]
        %v1115 = vld [vmem:[%s1113 + $0x1] sm:$0x1]
        %v1116 = vld [vmem:[%s1113 + $0x2] sm:$0x1]
        %v1117 = vld [vmem:[%s1113 + $0x3] sm:$0x1]
        %v1118 = vld [vmem:[%s1113 + $0x4] sm:$0x1]
        %v1119 = vld [vmem:[%s1113 + $0x5] sm:$0x1]
        %v1120 = vld [vmem:[%s1113 + $0x6] sm:$0x1]
        %v1121 = vld [vmem:[%s1113 + $0x7] sm:$0x1]
        %v1122 = vld [vmem:[%s1113 + $0x8] sm:$0x1]
        %v1123 = vld [vmem:[%s1113 + $0x9] sm:$0x1]
        %v1124 = vld [vmem:[%s1113 + $0xa] sm:$0x1]
        %v1125 = vld [vmem:[%s1113 + $0xb] sm:$0x1]
        %v1126 = vld [vmem:[%s1113 + $0xc] sm:$0x1]
        %v1127 = vld [vmem:[%s1113 + $0xd] sm:$0x1]
        %v1128 = vld [vmem:[%s1113 + $0xe] sm:$0x1]
        %v1129 = vld [vmem:[%s1113 + $0xf] sm:$0x1]
        %s1130 = sadd.s32 1, %s1112
        %s1131 = scalar_lea.vmem [#allocation2], %s1130
        %v1132 = vld [vmem:[%s1131] sm:$0x1]
        %v1133 = vld [vmem:[%s1131 + $0x1] sm:$0x1]
        %v1134 = vld [vmem:[%s1131 + $0x2] sm:$0x1]
        %v1135 = vld [vmem:[%s1131 + $0x3] sm:$0x1]
        %v1136 = vld [vmem:[%s1131 + $0x4] sm:$0x1]
        %v1137 = vld [vmem:[%s1131 + $0x5] sm:$0x1]
        %v1138 = vld [vmem:[%s1131 + $0x6] sm:$0x1]
        %v1139 = vld [vmem:[%s1131 + $0x7] sm:$0x1]
        %v1140 = vld [vmem:[%s1131 + $0x8] sm:$0x1]
        %v1141 = vld [vmem:[%s1131 + $0x9] sm:$0x1]
        %v1142 = vld [vmem:[%s1131 + $0xa] sm:$0x1]
        %v1143 = vld [vmem:[%s1131 + $0xb] sm:$0x1]
        %v1144 = vld [vmem:[%s1131 + $0xc] sm:$0x1]
        %v1145 = vld [vmem:[%s1131 + $0xd] sm:$0x1]
        %v1146 = vld [vmem:[%s1131 + $0xe] sm:$0x1]
        %v1147 = vld [vmem:[%s1131 + $0xf] sm:$0x1]
        %v1148 = vmax.f32 %v1114, %v1132
        %v1149 = vmax.f32 %v1115, %v1133
        %v1150 = vmax.f32 %v1116, %v1134
        %v1151 = vmax.f32 %v1117, %v1135
        %v1152 = vmax.f32 %v1118, %v1136
        %v1153 = vmax.f32 %v1119, %v1137
        %v1154 = vmax.f32 %v1120, %v1138
        %v1155 = vmax.f32 %v1121, %v1139
        %v1156 = vmax.f32 %v1122, %v1140
        %v1157 = vmax.f32 %v1123, %v1141
        %v1158 = vmax.f32 %v1124, %v1142
        %v1159 = vmax.f32 %v1125, %v1143
        %v1160 = vmax.f32 %v1126, %v1144
        %v1161 = vmax.f32 %v1127, %v1145
        %v1162 = vmax.f32 %v1128, %v1146
        %v1163 = vmax.f32 %v1129, %v1147
        %s1164 = sadd.s32 2, %s1112
        %s1165 = scalar_lea.vmem [#allocation2], %s1164
        %v1166 = vld [vmem:[%s1165] sm:$0x1]
        %v1167 = vld [vmem:[%s1165 + $0x1] sm:$0x1]
        %v1168 = vld [vmem:[%s1165 + $0x2] sm:$0x1]
        %v1169 = vld [vmem:[%s1165 + $0x3] sm:$0x1]
        %v1170 = vld [vmem:[%s1165 + $0x4] sm:$0x1]
        %v1171 = vld [vmem:[%s1165 + $0x5] sm:$0x1]
        %v1172 = vld [vmem:[%s1165 + $0x6] sm:$0x1]
        %v1173 = vld [vmem:[%s1165 + $0x7] sm:$0x1]
        %v1174 = vld [vmem:[%s1165 + $0x8] sm:$0x1]
        %v1175 = vld [vmem:[%s1165 + $0x9] sm:$0x1]
        %v1176 = vld [vmem:[%s1165 + $0xa] sm:$0x1]
        %v1177 = vld [vmem:[%s1165 + $0xb] sm:$0x1]
        %v1178 = vld [vmem:[%s1165 + $0xc] sm:$0x1]
        %v1179 = vld [vmem:[%s1165 + $0xd] sm:$0x1]
        %v1180 = vld [vmem:[%s1165 + $0xe] sm:$0x1]
        %v1181 = vld [vmem:[%s1165 + $0xf] sm:$0x1]
        %v1182 = vmax.f32 %v1148, %v1166
        %v1183 = vmax.f32 %v1149, %v1167
        %v1184 = vmax.f32 %v1150, %v1168
        %v1185 = vmax.f32 %v1151, %v1169
        %v1186 = vmax.f32 %v1152, %v1170
        %v1187 = vmax.f32 %v1153, %v1171
        %v1188 = vmax.f32 %v1154, %v1172
        %v1189 = vmax.f32 %v1155, %v1173
        %v1190 = vmax.f32 %v1156, %v1174
        %v1191 = vmax.f32 %v1157, %v1175
        %v1192 = vmax.f32 %v1158, %v1176
        %v1193 = vmax.f32 %v1159, %v1177
        %v1194 = vmax.f32 %v1160, %v1178
        %v1195 = vmax.f32 %v1161, %v1179
        %v1196 = vmax.f32 %v1162, %v1180
        %v1197 = vmax.f32 %v1163, %v1181
        %s1198 = sadd.s32 3, %s1112
        %s1199 = scalar_lea.vmem [#allocation2], %s1198
        %v1200 = vld [vmem:[%s1199] sm:$0x1]
        %v1201 = vld [vmem:[%s1199 + $0x1] sm:$0x1]
        %v1202 = vld [vmem:[%s1199 + $0x2] sm:$0x1]
        %v1203 = vld [vmem:[%s1199 + $0x3] sm:$0x1]
        %v1204 = vld [vmem:[%s1199 + $0x4] sm:$0x1]
        %v1205 = vld [vmem:[%s1199 + $0x5] sm:$0x1]
        %v1206 = vld [vmem:[%s1199 + $0x6] sm:$0x1]
        %v1207 = vld [vmem:[%s1199 + $0x7] sm:$0x1]
        %v1208 = vld [vmem:[%s1199 + $0x8] sm:$0x1]
        %v1209 = vld [vmem:[%s1199 + $0x9] sm:$0x1]
        %v1210 = vld [vmem:[%s1199 + $0xa] sm:$0x1]
        %v1211 = vld [vmem:[%s1199 + $0xb] sm:$0x1]
        %v1212 = vld [vmem:[%s1199 + $0xc] sm:$0x1]
        %v1213 = vld [vmem:[%s1199 + $0xd] sm:$0x1]
        %v1214 = vld [vmem:[%s1199 + $0xe] sm:$0x1]
        %v1215 = vld [vmem:[%s1199 + $0xf] sm:$0x1]
        %v1216 = vmax.f32 %v1182, %v1200
        %v1217 = vmax.f32 %v1183, %v1201
        %v1218 = vmax.f32 %v1184, %v1202
        %v1219 = vmax.f32 %v1185, %v1203
        %v1220 = vmax.f32 %v1186, %v1204
        %v1221 = vmax.f32 %v1187, %v1205
        %v1222 = vmax.f32 %v1188, %v1206
        %v1223 = vmax.f32 %v1189, %v1207
        %v1224 = vmax.f32 %v1190, %v1208
        %v1225 = vmax.f32 %v1191, %v1209
        %v1226 = vmax.f32 %v1192, %v1210
        %v1227 = vmax.f32 %v1193, %v1211
        %v1228 = vmax.f32 %v1194, %v1212
        %v1229 = vmax.f32 %v1195, %v1213
        %v1230 = vmax.f32 %v1196, %v1214
        %v1231 = vmax.f32 %v1197, %v1215
        %s1232 = sadd.s32 4, %s1112
        %s1233 = scalar_lea.vmem [#allocation2], %s1232
        %v1234 = vld [vmem:[%s1233] sm:$0x1]
        %v1235 = vld [vmem:[%s1233 + $0x1] sm:$0x1]
        %v1236 = vld [vmem:[%s1233 + $0x2] sm:$0x1]
        %v1237 = vld [vmem:[%s1233 + $0x3] sm:$0x1]
        %v1238 = vld [vmem:[%s1233 + $0x4] sm:$0x1]
        %v1239 = vld [vmem:[%s1233 + $0x5] sm:$0x1]
        %v1240 = vld [vmem:[%s1233 + $0x6] sm:$0x1]
        %v1241 = vld [vmem:[%s1233 + $0x7] sm:$0x1]
        %v1242 = vld [vmem:[%s1233 + $0x8] sm:$0x1]
        %v1243 = vld [vmem:[%s1233 + $0x9] sm:$0x1]
        %v1244 = vld [vmem:[%s1233 + $0xa] sm:$0x1]
        %v1245 = vld [vmem:[%s1233 + $0xb] sm:$0x1]
        %v1246 = vld [vmem:[%s1233 + $0xc] sm:$0x1]
        %v1247 = vld [vmem:[%s1233 + $0xd] sm:$0x1]
        %v1248 = vld [vmem:[%s1233 + $0xe] sm:$0x1]
        %v1249 = vld [vmem:[%s1233 + $0xf] sm:$0x1]
        %v1250 = vmax.f32 %v1216, %v1234
        %v1251 = vmax.f32 %v1217, %v1235
        %v1252 = vmax.f32 %v1218, %v1236
        %v1253 = vmax.f32 %v1219, %v1237
        %v1254 = vmax.f32 %v1220, %v1238
        %v1255 = vmax.f32 %v1221, %v1239
        %v1256 = vmax.f32 %v1222, %v1240
        %v1257 = vmax.f32 %v1223, %v1241
        %v1258 = vmax.f32 %v1224, %v1242
        %v1259 = vmax.f32 %v1225, %v1243
        %v1260 = vmax.f32 %v1226, %v1244
        %v1261 = vmax.f32 %v1227, %v1245
        %v1262 = vmax.f32 %v1228, %v1246
        %v1263 = vmax.f32 %v1229, %v1247
        %v1264 = vmax.f32 %v1230, %v1248
        %v1265 = vmax.f32 %v1231, %v1249
        %s1266 = sadd.s32 %s1107, 2
        %s1267 = smul.u32 %s1266, 16
        %s1268 = scalar_lea.vmem [#allocation3], %s1267
        %vm1269 = vcmask 24576
        %1270 = vst.msk [vmem:[%s1268] sm:$0x1] %vm1269, %v1250
        %1271 = vst.msk [vmem:[%s1268 + $0x1] sm:$0x1] %vm1269, %v1251
        %1272 = vst.msk [vmem:[%s1268 + $0x2] sm:$0x1] %vm1269, %v1252
        %1273 = vst.msk [vmem:[%s1268 + $0x3] sm:$0x1] %vm1269, %v1253
        %1274 = vst.msk [vmem:[%s1268 + $0x4] sm:$0x1] %vm1269, %v1254
        %1275 = vst.msk [vmem:[%s1268 + $0x5] sm:$0x1] %vm1269, %v1255
        %1276 = vst.msk [vmem:[%s1268 + $0x6] sm:$0x1] %vm1269, %v1256
        %1277 = vst.msk [vmem:[%s1268 + $0x7] sm:$0x1] %vm1269, %v1257
        %1278 = vst.msk [vmem:[%s1268 + $0x8] sm:$0x1] %vm1269, %v1258
        %1279 = vst.msk [vmem:[%s1268 + $0x9] sm:$0x1] %vm1269, %v1259
        %1280 = vst.msk [vmem:[%s1268 + $0xa] sm:$0x1] %vm1269, %v1260
        %1281 = vst.msk [vmem:[%s1268 + $0xb] sm:$0x1] %vm1269, %v1261
        %1282 = vst.msk [vmem:[%s1268 + $0xc] sm:$0x1] %vm1269, %v1262
        %1283 = vst.msk [vmem:[%s1268 + $0xd] sm:$0x1] %vm1269, %v1263
        %1284 = vst.msk [vmem:[%s1268 + $0xe] sm:$0x1] %vm1269, %v1264
        %1285 = vst.msk [vmem:[%s1268 + $0xf] sm:$0x1] %vm1269, %v1265
      $region68: #{tpu_custom_call.1} parent=23 // loop_footer
        %s1111 = sadd.s32 1, %s1107
      $region69: #{tpu_custom_call.1} parent=23 // loop_footer_branch
        %1106 = sbr.rel target = $region65
      $region70: #{tpu_custom_call.1} parent=23 // loop_exit
        _
      loop: start=0, step=1, limit=16
      $region71: #{tpu_custom_call.1} parent=23 // loop_pre_header
        _
      $region72: #{tpu_custom_call.1} parent=23 // loop_header
        %s1287 = sphi 0, %s1291
        %p1288 = scmp.ge.s32.totalorder %s1287, 16
      $region73: #{tpu_custom_call.1} parent=23 // loop_header_branch
        %1290 = sbr.rel (%p1288) target = $region77
      $region74: #{tpu_custom_call.1} parent=23 // loop_body
        %s1292 = smul.u32 %s1287, 16
        %s1293 = scalar_lea.vmem [#allocation3], %s1292
        %v1294 = vld [vmem:[%s1293] sm:$0x1]
        %v1295 = vld [vmem:[%s1293 + $0x1] sm:$0x1]
        %v1296 = vld [vmem:[%s1293 + $0x2] sm:$0x1]
        %v1297 = vld [vmem:[%s1293 + $0x3] sm:$0x1]
        %v1298 = vld [vmem:[%s1293 + $0x4] sm:$0x1]
        %v1299 = vld [vmem:[%s1293 + $0x5] sm:$0x1]
        %v1300 = vld [vmem:[%s1293 + $0x6] sm:$0x1]
        %v1301 = vld [vmem:[%s1293 + $0x7] sm:$0x1]
        %v1302 = vld [vmem:[%s1293 + $0x8] sm:$0x1]
        %v1303 = vld [vmem:[%s1293 + $0x9] sm:$0x1]
        %v1304 = vld [vmem:[%s1293 + $0xa] sm:$0x1]
        %v1305 = vld [vmem:[%s1293 + $0xb] sm:$0x1]
        %v1306 = vld [vmem:[%s1293 + $0xc] sm:$0x1]
        %v1307 = vld [vmem:[%s1293 + $0xd] sm:$0x1]
        %v1308 = vld [vmem:[%s1293 + $0xe] sm:$0x1]
        %v1309 = vld [vmem:[%s1293 + $0xf] sm:$0x1]
        %s1310 = sadd.s32 %s1287, 1
        %s1311 = smul.u32 %s1310, 16
        %s1312 = scalar_lea.vmem [#allocation3], %s1311
        %v1313 = vld [vmem:[%s1312] sm:$0x1]
        %v1314 = vld [vmem:[%s1312 + $0x1] sm:$0x1]
        %v1315 = vld [vmem:[%s1312 + $0x2] sm:$0x1]
        %v1316 = vld [vmem:[%s1312 + $0x3] sm:$0x1]
        %v1317 = vld [vmem:[%s1312 + $0x4] sm:$0x1]
        %v1318 = vld [vmem:[%s1312 + $0x5] sm:$0x1]
        %v1319 = vld [vmem:[%s1312 + $0x6] sm:$0x1]
        %v1320 = vld [vmem:[%s1312 + $0x7] sm:$0x1]
        %v1321 = vld [vmem:[%s1312 + $0x8] sm:$0x1]
        %v1322 = vld [vmem:[%s1312 + $0x9] sm:$0x1]
        %v1323 = vld [vmem:[%s1312 + $0xa] sm:$0x1]
        %v1324 = vld [vmem:[%s1312 + $0xb] sm:$0x1]
        %v1325 = vld [vmem:[%s1312 + $0xc] sm:$0x1]
        %v1326 = vld [vmem:[%s1312 + $0xd] sm:$0x1]
        %v1327 = vld [vmem:[%s1312 + $0xe] sm:$0x1]
        %v1328 = vld [vmem:[%s1312 + $0xf] sm:$0x1]
        %v1329 = vmax.f32 %v1294, %v1313
        %v1330 = vmax.f32 %v1295, %v1314
        %v1331 = vmax.f32 %v1296, %v1315
        %v1332 = vmax.f32 %v1297, %v1316
        %v1333 = vmax.f32 %v1298, %v1317
        %v1334 = vmax.f32 %v1299, %v1318
        %v1335 = vmax.f32 %v1300, %v1319
        %v1336 = vmax.f32 %v1301, %v1320
        %v1337 = vmax.f32 %v1302, %v1321
        %v1338 = vmax.f32 %v1303, %v1322
        %v1339 = vmax.f32 %v1304, %v1323
        %v1340 = vmax.f32 %v1305, %v1324
        %v1341 = vmax.f32 %v1306, %v1325
        %v1342 = vmax.f32 %v1307, %v1326
        %v1343 = vmax.f32 %v1308, %v1327
        %v1344 = vmax.f32 %v1309, %v1328
        %s1345 = sadd.s32 %s1287, 2
        %s1346 = smul.u32 %s1345, 16
        %s1347 = scalar_lea.vmem [#allocation3], %s1346
        %v1348 = vld [vmem:[%s1347] sm:$0x1]
        %v1349 = vld [vmem:[%s1347 + $0x1] sm:$0x1]
        %v1350 = vld [vmem:[%s1347 + $0x2] sm:$0x1]
        %v1351 = vld [vmem:[%s1347 + $0x3] sm:$0x1]
        %v1352 = vld [vmem:[%s1347 + $0x4] sm:$0x1]
        %v1353 = vld [vmem:[%s1347 + $0x5] sm:$0x1]
        %v1354 = vld [vmem:[%s1347 + $0x6] sm:$0x1]
        %v1355 = vld [vmem:[%s1347 + $0x7] sm:$0x1]
        %v1356 = vld [vmem:[%s1347 + $0x8] sm:$0x1]
        %v1357 = vld [vmem:[%s1347 + $0x9] sm:$0x1]
        %v1358 = vld [vmem:[%s1347 + $0xa] sm:$0x1]
        %v1359 = vld [vmem:[%s1347 + $0xb] sm:$0x1]
        %v1360 = vld [vmem:[%s1347 + $0xc] sm:$0x1]
        %v1361 = vld [vmem:[%s1347 + $0xd] sm:$0x1]
        %v1362 = vld [vmem:[%s1347 + $0xe] sm:$0x1]
        %v1363 = vld [vmem:[%s1347 + $0xf] sm:$0x1]
        %v1364 = vmax.f32 %v1329, %v1348
        %v1365 = vmax.f32 %v1330, %v1349
        %v1366 = vmax.f32 %v1331, %v1350
        %v1367 = vmax.f32 %v1332, %v1351
        %v1368 = vmax.f32 %v1333, %v1352
        %v1369 = vmax.f32 %v1334, %v1353
        %v1370 = vmax.f32 %v1335, %v1354
        %v1371 = vmax.f32 %v1336, %v1355
        %v1372 = vmax.f32 %v1337, %v1356
        %v1373 = vmax.f32 %v1338, %v1357
        %v1374 = vmax.f32 %v1339, %v1358
        %v1375 = vmax.f32 %v1340, %v1359
        %v1376 = vmax.f32 %v1341, %v1360
        %v1377 = vmax.f32 %v1342, %v1361
        %v1378 = vmax.f32 %v1343, %v1362
        %v1379 = vmax.f32 %v1344, %v1363
        %s1380 = sadd.s32 %s1287, 3
        %s1381 = smul.u32 %s1380, 16
        %s1382 = scalar_lea.vmem [#allocation3], %s1381
        %v1383 = vld [vmem:[%s1382] sm:$0x1]
        %v1384 = vld [vmem:[%s1382 + $0x1] sm:$0x1]
        %v1385 = vld [vmem:[%s1382 + $0x2] sm:$0x1]
        %v1386 = vld [vmem:[%s1382 + $0x3] sm:$0x1]
        %v1387 = vld [vmem:[%s1382 + $0x4] sm:$0x1]
        %v1388 = vld [vmem:[%s1382 + $0x5] sm:$0x1]
        %v1389 = vld [vmem:[%s1382 + $0x6] sm:$0x1]
        %v1390 = vld [vmem:[%s1382 + $0x7] sm:$0x1]
        %v1391 = vld [vmem:[%s1382 + $0x8] sm:$0x1]
        %v1392 = vld [vmem:[%s1382 + $0x9] sm:$0x1]
        %v1393 = vld [vmem:[%s1382 + $0xa] sm:$0x1]
        %v1394 = vld [vmem:[%s1382 + $0xb] sm:$0x1]
        %v1395 = vld [vmem:[%s1382 + $0xc] sm:$0x1]
        %v1396 = vld [vmem:[%s1382 + $0xd] sm:$0x1]
        %v1397 = vld [vmem:[%s1382 + $0xe] sm:$0x1]
        %v1398 = vld [vmem:[%s1382 + $0xf] sm:$0x1]
        %v1399 = vmax.f32 %v1364, %v1383
        %v1400 = vmax.f32 %v1365, %v1384
        %v1401 = vmax.f32 %v1366, %v1385
        %v1402 = vmax.f32 %v1367, %v1386
        %v1403 = vmax.f32 %v1368, %v1387
        %v1404 = vmax.f32 %v1369, %v1388
        %v1405 = vmax.f32 %v1370, %v1389
        %v1406 = vmax.f32 %v1371, %v1390
        %v1407 = vmax.f32 %v1372, %v1391
        %v1408 = vmax.f32 %v1373, %v1392
        %v1409 = vmax.f32 %v1374, %v1393
        %v1410 = vmax.f32 %v1375, %v1394
        %v1411 = vmax.f32 %v1376, %v1395
        %v1412 = vmax.f32 %v1377, %v1396
        %v1413 = vmax.f32 %v1378, %v1397
        %v1414 = vmax.f32 %v1379, %v1398
        %s1415 = sadd.s32 %s1287, 4
        %s1416 = smul.u32 %s1415, 16
        %s1417 = scalar_lea.vmem [#allocation3], %s1416
        %v1418 = vld [vmem:[%s1417] sm:$0x1]
        %v1419 = vld [vmem:[%s1417 + $0x1] sm:$0x1]
        %v1420 = vld [vmem:[%s1417 + $0x2] sm:$0x1]
        %v1421 = vld [vmem:[%s1417 + $0x3] sm:$0x1]
        %v1422 = vld [vmem:[%s1417 + $0x4] sm:$0x1]
        %v1423 = vld [vmem:[%s1417 + $0x5] sm:$0x1]
        %v1424 = vld [vmem:[%s1417 + $0x6] sm:$0x1]
        %v1425 = vld [vmem:[%s1417 + $0x7] sm:$0x1]
        %v1426 = vld [vmem:[%s1417 + $0x8] sm:$0x1]
        %v1427 = vld [vmem:[%s1417 + $0x9] sm:$0x1]
        %v1428 = vld [vmem:[%s1417 + $0xa] sm:$0x1]
        %v1429 = vld [vmem:[%s1417 + $0xb] sm:$0x1]
        %v1430 = vld [vmem:[%s1417 + $0xc] sm:$0x1]
        %v1431 = vld [vmem:[%s1417 + $0xd] sm:$0x1]
        %v1432 = vld [vmem:[%s1417 + $0xe] sm:$0x1]
        %v1433 = vld [vmem:[%s1417 + $0xf] sm:$0x1]
        %v1434 = vmax.f32 %v1399, %v1418
        %v1435 = vmax.f32 %v1400, %v1419
        %v1436 = vmax.f32 %v1401, %v1420
        %v1437 = vmax.f32 %v1402, %v1421
        %v1438 = vmax.f32 %v1403, %v1422
        %v1439 = vmax.f32 %v1404, %v1423
        %v1440 = vmax.f32 %v1405, %v1424
        %v1441 = vmax.f32 %v1406, %v1425
        %v1442 = vmax.f32 %v1407, %v1426
        %v1443 = vmax.f32 %v1408, %v1427
        %v1444 = vmax.f32 %v1409, %v1428
        %v1445 = vmax.f32 %v1410, %v1429
        %v1446 = vmax.f32 %v1411, %v1430
        %v1447 = vmax.f32 %v1412, %v1431
        %v1448 = vmax.f32 %v1413, %v1432
        %v1449 = vmax.f32 %v1414, %v1433
        %s1450 = smul.u32 %s1287, 64
        %s1451 = sadd.s32 2, %s1450
        %s1452 = scalar_lea.vmem %s142, %s1451
        %vm1453 = vcmask 24576
        %1454 = vst.msk [vmem:[%s1452] sm:$0x1] %vm1453, %v1434
        %1455 = vst.msk [vmem:[%s1452 + $0x4] sm:$0x1] %vm1453, %v1435
        %1456 = vst.msk [vmem:[%s1452 + $0x8] sm:$0x1] %vm1453, %v1436
        %1457 = vst.msk [vmem:[%s1452 + $0xc] sm:$0x1] %vm1453, %v1437
        %1458 = vst.msk [vmem:[%s1452 + $0x10] sm:$0x1] %vm1453, %v1438
        %1459 = vst.msk [vmem:[%s1452 + $0x14] sm:$0x1] %vm1453, %v1439
        %1460 = vst.msk [vmem:[%s1452 + $0x18] sm:$0x1] %vm1453, %v1440
        %1461 = vst.msk [vmem:[%s1452 + $0x1c] sm:$0x1] %vm1453, %v1441
        %1462 = vst.msk [vmem:[%s1452 + $0x20] sm:$0x1] %vm1453, %v1442
        %1463 = vst.msk [vmem:[%s1452 + $0x24] sm:$0x1] %vm1453, %v1443
        %1464 = vst.msk [vmem:[%s1452 + $0x28] sm:$0x1] %vm1453, %v1444
        %1465 = vst.msk [vmem:[%s1452 + $0x2c] sm:$0x1] %vm1453, %v1445
        %1466 = vst.msk [vmem:[%s1452 + $0x30] sm:$0x1] %vm1453, %v1446
        %1467 = vst.msk [vmem:[%s1452 + $0x34] sm:$0x1] %vm1453, %v1447
        %1468 = vst.msk [vmem:[%s1452 + $0x38] sm:$0x1] %vm1453, %v1448
        %1469 = vst.msk [vmem:[%s1452 + $0x3c] sm:$0x1] %vm1453, %v1449
      $region75: #{tpu_custom_call.1} parent=23 // loop_footer
        %s1291 = sadd.s32 1, %s1287
      $region76: #{tpu_custom_call.1} parent=23 // loop_footer_branch
        %1286 = sbr.rel target = $region72
      $region77: #{tpu_custom_call.1} parent=23 // loop_exit
        _
      %p1470 = scmp.lt.s32.totalorder %s16, 1
      %s1471 = scalar_select %p1470, %s16, 1
      %p1472 = scmp.lt.s32.totalorder %s17, 0
      %s1473 = scalar_select %p1472, %s17, 0
      %s1474 = smul.addr %s1471, 1024
      %s1475 = sadd.s32 %s1473, %s1474
      %s1476 = scalar_lea.vmem %s1, %s1475
      // Predicated region
      $region78: #{tpu_custom_call.1} parent=23 // pred_check
        %p1477 = pneg %p72
      $region79: #{tpu_custom_call.1} parent=23 // pred_check_branch
        %1479 = sbr.rel (%p1477) target = $region81
      $region80: #{tpu_custom_call.1} parent=23 // pred_region
        _
      $region81: #{tpu_custom_call.1} parent=23 // pred_fallthru
        _
    $region24: #{tpu_custom_call.1} parent=5 // pred_fallthru
      _
    %p1480 = scmp.le.s32.totalorder 2, %s7
    // Predicated region
    $region82: #{tpu_custom_call.1} parent=5 // pred_check
      %p1481 = pneg %p1480
    $region83: #{tpu_custom_call.1} parent=5 // pred_check_branch
      %1483 = sbr.rel (%p1481) target = $region85
    $region84: #{tpu_custom_call.1} parent=5 // pred_region
      %s1484 = ssub.s32 %s7, 2
      // Predicated region
      $region86: #{tpu_custom_call.1} parent=84 // pred_check
        %p1485 = pneg %p78
      $region87: #{tpu_custom_call.1} parent=84 // pred_check_branch
        %1487 = sbr.rel (%p1485) target = $region89
      $region88: #{tpu_custom_call.1} parent=84 // pred_region
        %p1488 = scmp.lt.s32.totalorder %s18, 1
        %s1489 = scalar_select %p1488, %s18, 1
        %p1490 = scmp.lt.s32.totalorder %s19, 0
        %s1491 = scalar_select %p1490, %s19, 0
        %s1492 = smul.addr %s1489, 1024
        %s1493 = sadd.s32 %s1491, %s1492
        %s1494 = scalar_lea.vmem %s1, %s1493
      $region89: #{tpu_custom_call.1} parent=84 // pred_fallthru
        _
    $region85: #{tpu_custom_call.1} parent=5 // pred_fallthru
      _
  $region6: #{tpu_custom_call.1} parent=0 // loop_footer
    %s11 = sadd.s32 1, %s7
  $region7: #{tpu_custom_call.1} parent=0 // loop_footer_branch
    %6 = sbr.rel target = $region3
  $region8: #{tpu_custom_call.1} parent=0 // loop_exit
    _

</llo_original>
